<compile_context>
chip_gen: v7x
topology: tpu7x:2x2x1
jax: 0.10.0
libtpu: 0.0.40
codegen_flags: <defaults>
</compile_context>

<pallas_src>
import functools

import jax
import jax.numpy as jnp
from jax import lax
from jax.experimental import pallas as pl

BN_EPS = 1e-5
Z_SCORE = 1.96


def _softplus(x):
    # matches F.softplus(beta=1, threshold=20)
    safe = jnp.minimum(x, 20.0)
    return jnp.where(x > 20.0, x, jnp.log1p(jnp.exp(safe)))


# ----------------------------------------------------------------------------
# One fused kernel: eval heads + MC-dropout epistemic sampling + finalize
# ----------------------------------------------------------------------------
def uq_fused_kernel(
    x_ref,
    # eval-mode heads, BatchNorm(eval) folded into the Linear weights
    mw1, mb1, mw2, mb2, mw3, mb3,          # mean head
    vw1, vb1, vw2, vb2, vw3, vb3,          # variance head   (softplus output)
    aw1, ab1, aw2, ab2, aw3, ab3,          # aleatoric head  (softplus output)
    # mean head raw params for the train-mode MC-dropout path
    rw1, rb1, rg1, rbe1, rw2, rb2, rg2, rbe2,
    # pre-scaled dropout keep-masks (values are 0 or 1/(1-p))
    mask1, mask2,
    # outputs
    slab_ref, samples_ref,
    *, n_samples):
    x = x_ref[...]
    B = x.shape[0]
    G = mw3.shape[1]
    H1 = rw1.shape[1]
    H2 = rw2.shape[1]

    # ---- eval-mode heads: Linear(folded BN) -> ReLU -> Linear(folded BN) -> ReLU -> Linear
    def head(w1, b1, w2, b2, w3, b3, softplus):
        h = jnp.maximum(
            jnp.dot(x, w1[...], preferred_element_type=jnp.float32) + b1[...], 0.0)
        h = jnp.maximum(
            jnp.dot(h, w2[...], preferred_element_type=jnp.float32) + b2[...], 0.0)
        o = jnp.dot(h, w3[...], preferred_element_type=jnp.float32) + b3[...]
        return _softplus(o) if softplus else o

    velocity_mean = head(mw1, mb1, mw2, mb2, mw3, mb3, False)
    velocity_var = head(vw1, vb1, vw2, vb2, vw3, vb3, True)
    aleatoric = head(aw1, ab1, aw2, ab2, aw3, ab3, True)

    # ---- MC-dropout epistemic path (train-mode BatchNorm, inverted dropout).
    # Layer 1 is identical for every sample (same input, no dropout before it):
    # compute once on (B, H1) and broadcast to all samples.
    z1 = jnp.dot(x, rw1[...], preferred_element_type=jnp.float32) + rb1[...]
    mu1 = jnp.mean(z1, axis=0, keepdims=True)
    var1 = jnp.mean((z1 - mu1) ** 2, axis=0, keepdims=True)      # biased (train BN)
    h1 = jnp.maximum(
        (z1 - mu1) * lax.rsqrt(var1 + BN_EPS) * rg1[...] + rbe1[...], 0.0)

    # per-sample dropout, one big (n_samples*B, H1) activation
    h1_s = (jnp.broadcast_to(h1[None], (n_samples, B, H1))
            .reshape(n_samples * B, H1) * mask1[...])

    # layer 2: shared matmul, per-sample BatchNorm statistics over the batch dim
    z2 = jnp.dot(h1_s, rw2[...], preferred_element_type=jnp.float32) + rb2[...]
    z2s = z2.reshape(n_samples, B, H2)
    mu2 = jnp.mean(z2s, axis=1, keepdims=True)
    var2 = jnp.mean((z2s - mu2) ** 2, axis=1, keepdims=True)
    h2s = jnp.maximum(
        (z2s - mu2) * lax.rsqrt(var2 + BN_EPS) * rg2[...] + rbe2[...], 0.0)
    h2 = h2s.reshape(n_samples * B, H2) * mask2[...]

    # output layer (mean head final Linear; no BN after it, so folded == raw)
    o = jnp.dot(h2, mw3[...], preferred_element_type=jnp.float32) + mb3[...]
    samples = o.reshape(n_samples, B, G)
    samples_ref[...] = samples

    epi_mean = jnp.mean(samples, axis=0)                          # (B, G)
    dev = samples - epi_mean[None]
    # unbiased variance over samples (torch.var default, dim=0); clamp for sqrt
    epi_var = jnp.maximum(jnp.sum(dev * dev, axis=0) * (1.0 / (n_samples - 1)), 0.0)

    total = aleatoric + epi_var
    std = jnp.sqrt(total)
    lower = velocity_mean - Z_SCORE * std
    upper = velocity_mean + Z_SCORE * std

    # lane-dense packed output slab: 8*G columns (= 128 lanes for G=16)
    slab_ref[...] = jnp.concatenate(
        [velocity_mean, velocity_var, aleatoric, epi_mean, epi_var,
         total, lower, upper], axis=-1)


# ----------------------------------------------------------------------------
# Host-side helpers
# ----------------------------------------------------------------------------
def fold_batchnorm(w, b, g, be, rm, rv):
    """Fold eval-mode BatchNorm1d (running stats) into the preceding Linear."""
    scale = g / jnp.sqrt(rv + BN_EPS)            # (1, H)
    return w * scale, (b - rm) * scale + be


def _fold_head(p):
    w1f, b1f = fold_batchnorm(p["w1"], p["b1"], p["g1"], p["be1"], p["rm1"], p["rv1"])
    w2f, b2f = fold_batchnorm(p["w2"], p["b2"], p["g2"], p["be2"], p["rm2"], p["rv2"])
    return (w1f, b1f, w2f, b2f, p["w3"], p["b3"])


def init_mlp_params(key, in_dim, hidden, out_dim):
    h1, h2 = hidden
    k1, k2, k3 = jax.random.split(key, 3)

    def linear_w(k, fin, fout):
        return (jax.random.normal(k, (fin, fout), jnp.float32)
                * jnp.sqrt(2.0 / fin)).astype(jnp.float32)

    return dict(
        w1=linear_w(k1, in_dim, h1), b1=jnp.zeros((1, h1), jnp.float32),
        g1=jnp.ones((1, h1), jnp.float32), be1=jnp.zeros((1, h1), jnp.float32),
        rm1=jnp.zeros((1, h1), jnp.float32), rv1=jnp.ones((1, h1), jnp.float32),
        w2=linear_w(k2, h1, h2), b2=jnp.zeros((1, h2), jnp.float32),
        g2=jnp.ones((1, h2), jnp.float32), be2=jnp.zeros((1, h2), jnp.float32),
        rm2=jnp.zeros((1, h2), jnp.float32), rv2=jnp.ones((1, h2), jnp.float32),
        w3=linear_w(k3, h2, out_dim), b3=jnp.zeros((1, out_dim), jnp.float32),
    )


# ----------------------------------------------------------------------------
# Full module forward
# ----------------------------------------------------------------------------
def uncertainty_quantification_forward(latent, params, n_samples, seed=0, p_drop=0.2):
    assert n_samples >= 2, "unbiased variance needs at least 2 MC samples"
    mean_p, var_p, alea_p = params["mean"], params["var"], params["alea"]
    B = latent.shape[0]
    H1 = mean_p["w1"].shape[1]
    H2 = mean_p["w2"].shape[1]
    G = mean_p["w3"].shape[1]

    mf = _fold_head(mean_p)
    vf = _fold_head(var_p)
    af = _fold_head(alea_p)

    # Dropout keep-masks drawn outside the kernel (in-kernel TPU PRNG has no
    # CPU/interpret lowering); pre-scaled by 1/(1-p) => dropout is one multiply.
    k1, k2 = jax.random.split(jax.random.PRNGKey(seed))
    inv_keep = 1.0 / (1.0 - p_drop)
    mask1 = (jax.random.bernoulli(k1, 1.0 - p_drop, (n_samples * B, H1))
             .astype(jnp.float32) * inv_keep)
    mask2 = (jax.random.bernoulli(k2, 1.0 - p_drop, (n_samples * B, H2))
             .astype(jnp.float32) * inv_keep)

    kern = functools.partial(uq_fused_kernel, n_samples=n_samples)
    slab, samples = pl.pallas_call(
        kern,
        out_shape=(jax.ShapeDtypeStruct((B, 8 * G), jnp.float32),
                   jax.ShapeDtypeStruct((n_samples, B, G), jnp.float32)),
    )(latent,
      *mf, *vf, *af,
      mean_p["w1"], mean_p["b1"], mean_p["g1"], mean_p["be1"],
      mean_p["w2"], mean_p["b2"], mean_p["g2"], mean_p["be2"],
      mask1, mask2)

    def col(i):
        return slab[:, i * G:(i + 1) * G]

    return {
        "velocity_mean": col(0),
        "velocity_var": col(1),
        "aleatoric_uncertainty": col(2),
        "epistemic_mean": col(3),
        "epistemic_uncertainty": col(4),
        "total_uncertainty": col(5),
        "epistemic_samples": samples,
        "confidence_intervals": {"lower_bound": col(6), "upper_bound": col(7)},
    }


if __name__ == "__main__":
    BATCH, LATENT_DIM, N_GENES, N_SAMPLES = 8, 32, 16, 16

    key = jax.random.PRNGKey(0)
    k_lat, k_mean, k_var, k_alea = jax.random.split(key, 4)
    latent = jax.random.normal(k_lat, (BATCH, LATENT_DIM), jnp.float32)

    params = {
        "mean": init_mlp_params(k_mean, LATENT_DIM, (128, 64), N_GENES),
        "var": init_mlp_params(k_var, LATENT_DIM, (128, 64), N_GENES),
        "alea": init_mlp_params(k_alea, LATENT_DIM, (64, 32), N_GENES),
        # registered in torch __init__ but never used in forward
        "epistemic_scale": jnp.float32(0.1),
    }

    out = uncertainty_quantification_forward(latent, params, N_SAMPLES, seed=42)
    out = jax.block_until_ready(out)

    assert out["velocity_mean"].shape == (BATCH, N_GENES)
    assert out["velocity_var"].shape == (BATCH, N_GENES)
    assert out["aleatoric_uncertainty"].shape == (BATCH, N_GENES)
    assert out["epistemic_uncertainty"].shape == (BATCH, N_GENES)
    assert out["total_uncertainty"].shape == (BATCH, N_GENES)
    assert out["epistemic_samples"].shape == (N_SAMPLES, BATCH, N_GENES)
    assert out["confidence_intervals"]["lower_bound"].shape == (BATCH, N_GENES)
    assert bool(jnp.all(out["epistemic_uncertainty"] >= 0.0))
    assert bool(jnp.all(out["velocity_var"] >= 0.0))
    assert bool(jnp.all(out["confidence_intervals"]["upper_bound"]
                        >= out["confidence_intervals"]["lower_bound"]))
    assert bool(jnp.all(jnp.isfinite(out["total_uncertainty"])))

    print("KERNEL_OK")
</pallas_src>

<mosaic_0001>
module attributes {stable_mosaic.version = 11 : i64} {
  func.func @uq_fused_kernel(%arg0: memref<8x32xf32, #tpu.memory_space<vmem>>, %arg1: memref<32x128xf32, #tpu.memory_space<vmem>>, %arg2: memref<1x128xf32, #tpu.memory_space<vmem>>, %arg3: memref<128x64xf32, #tpu.memory_space<vmem>>, %arg4: memref<1x64xf32, #tpu.memory_space<vmem>>, %arg5: memref<64x16xf32, #tpu.memory_space<vmem>>, %arg6: memref<1x16xf32, #tpu.memory_space<vmem>>, %arg7: memref<32x128xf32, #tpu.memory_space<vmem>>, %arg8: memref<1x128xf32, #tpu.memory_space<vmem>>, %arg9: memref<128x64xf32, #tpu.memory_space<vmem>>, %arg10: memref<1x64xf32, #tpu.memory_space<vmem>>, %arg11: memref<64x16xf32, #tpu.memory_space<vmem>>, %arg12: memref<1x16xf32, #tpu.memory_space<vmem>>, %arg13: memref<32x64xf32, #tpu.memory_space<vmem>>, %arg14: memref<1x64xf32, #tpu.memory_space<vmem>>, %arg15: memref<64x32xf32, #tpu.memory_space<vmem>>, %arg16: memref<1x32xf32, #tpu.memory_space<vmem>>, %arg17: memref<32x16xf32, #tpu.memory_space<vmem>>, %arg18: memref<1x16xf32, #tpu.memory_space<vmem>>, %arg19: memref<32x128xf32, #tpu.memory_space<vmem>>, %arg20: memref<1x128xf32, #tpu.memory_space<vmem>>, %arg21: memref<1x128xf32, #tpu.memory_space<vmem>>, %arg22: memref<1x128xf32, #tpu.memory_space<vmem>>, %arg23: memref<128x64xf32, #tpu.memory_space<vmem>>, %arg24: memref<1x64xf32, #tpu.memory_space<vmem>>, %arg25: memref<1x64xf32, #tpu.memory_space<vmem>>, %arg26: memref<1x64xf32, #tpu.memory_space<vmem>>, %arg27: memref<128x128xf32, #tpu.memory_space<vmem>>, %arg28: memref<128x64xf32, #tpu.memory_space<vmem>>, %arg29: memref<8x128xf32, #tpu.memory_space<vmem>>, %arg30: memref<16x8x16xf32, #tpu.memory_space<vmem>>) attributes {dimension_semantics = [], scalar_prefetch = 0 : i64, scratch_operands = 0 : i64, tpu.core_type = #tpu.core_type<tc>} {
    %c0 = arith.constant 0 : index
    %c0_0 = arith.constant 0 : index
    %0 = vector.load %arg0[%c0, %c0_0] : memref<8x32xf32, #tpu.memory_space<vmem>>, vector<8x32xf32>
    %c0_1 = arith.constant 0 : index
    %c0_2 = arith.constant 0 : index
    %1 = vector.load %arg1[%c0_1, %c0_2] : memref<32x128xf32, #tpu.memory_space<vmem>>, vector<32x128xf32>
    %cst = arith.constant dense<0.000000e+00> : vector<8x128xf32>
    %2 = tpu.matmul %0, %1, %cst {dimension_numbers = #tpu.dot_dimension_numbers<[1], [0], [0], [1], [0, 0, 1, 1], [], []>} : vector<8x32xf32>, vector<32x128xf32>, vector<8x128xf32> -> vector<8x128xf32>
    %c0_3 = arith.constant 0 : index
    %c0_4 = arith.constant 0 : index
    %3 = vector.load %arg2[%c0_3, %c0_4] : memref<1x128xf32, #tpu.memory_space<vmem>>, vector<1x128xf32>
    %4 = vector.broadcast %3 : vector<1x128xf32> to vector<8x128xf32>
    %5 = arith.addf %2, %4 : vector<8x128xf32>
    %cst_5 = arith.constant 0.000000e+00 : f32
    %6 = vector.broadcast %cst_5 : f32 to vector<8x128xf32>
    %7 = arith.maximumf %5, %6 : vector<8x128xf32>
    %c0_6 = arith.constant 0 : index
    %c0_7 = arith.constant 0 : index
    %8 = vector.load %arg3[%c0_6, %c0_7] : memref<128x64xf32, #tpu.memory_space<vmem>>, vector<128x64xf32>
    %cst_8 = arith.constant dense<0.000000e+00> : vector<8x64xf32>
    %9 = tpu.matmul %7, %8, %cst_8 {dimension_numbers = #tpu.dot_dimension_numbers<[1], [0], [0], [1], [0, 0, 1, 1], [], []>} : vector<8x128xf32>, vector<128x64xf32>, vector<8x64xf32> -> vector<8x64xf32>
    %c0_9 = arith.constant 0 : index
    %c0_10 = arith.constant 0 : index
    %10 = vector.load %arg4[%c0_9, %c0_10] : memref<1x64xf32, #tpu.memory_space<vmem>>, vector<1x64xf32>
    %11 = vector.broadcast %10 : vector<1x64xf32> to vector<8x64xf32>
    %12 = arith.addf %9, %11 : vector<8x64xf32>
    %cst_11 = arith.constant 0.000000e+00 : f32
    %13 = vector.broadcast %cst_11 : f32 to vector<8x64xf32>
    %14 = arith.maximumf %12, %13 : vector<8x64xf32>
    %c0_12 = arith.constant 0 : index
    %c0_13 = arith.constant 0 : index
    %15 = vector.load %arg5[%c0_12, %c0_13] : memref<64x16xf32, #tpu.memory_space<vmem>>, vector<64x16xf32>
    %cst_14 = arith.constant dense<0.000000e+00> : vector<8x16xf32>
    %16 = tpu.matmul %14, %15, %cst_14 {dimension_numbers = #tpu.dot_dimension_numbers<[1], [0], [0], [1], [0, 0, 1, 1], [], []>} : vector<8x64xf32>, vector<64x16xf32>, vector<8x16xf32> -> vector<8x16xf32>
    %c0_15 = arith.constant 0 : index
    %c0_16 = arith.constant 0 : index
    %17 = vector.load %arg6[%c0_15, %c0_16] : memref<1x16xf32, #tpu.memory_space<vmem>>, vector<1x16xf32>
    %18 = vector.broadcast %17 : vector<1x16xf32> to vector<8x16xf32>
    %19 = arith.addf %16, %18 : vector<8x16xf32>
    %c0_17 = arith.constant 0 : index
    %c0_18 = arith.constant 0 : index
    %20 = vector.load %arg7[%c0_17, %c0_18] : memref<32x128xf32, #tpu.memory_space<vmem>>, vector<32x128xf32>
    %cst_19 = arith.constant dense<0.000000e+00> : vector<8x128xf32>
    %21 = tpu.matmul %0, %20, %cst_19 {dimension_numbers = #tpu.dot_dimension_numbers<[1], [0], [0], [1], [0, 0, 1, 1], [], []>} : vector<8x32xf32>, vector<32x128xf32>, vector<8x128xf32> -> vector<8x128xf32>
    %c0_20 = arith.constant 0 : index
    %c0_21 = arith.constant 0 : index
    %22 = vector.load %arg8[%c0_20, %c0_21] : memref<1x128xf32, #tpu.memory_space<vmem>>, vector<1x128xf32>
    %23 = vector.broadcast %22 : vector<1x128xf32> to vector<8x128xf32>
    %24 = arith.addf %21, %23 : vector<8x128xf32>
    %cst_22 = arith.constant 0.000000e+00 : f32
    %25 = vector.broadcast %cst_22 : f32 to vector<8x128xf32>
    %26 = arith.maximumf %24, %25 : vector<8x128xf32>
    %c0_23 = arith.constant 0 : index
    %c0_24 = arith.constant 0 : index
    %27 = vector.load %arg9[%c0_23, %c0_24] : memref<128x64xf32, #tpu.memory_space<vmem>>, vector<128x64xf32>
    %cst_25 = arith.constant dense<0.000000e+00> : vector<8x64xf32>
    %28 = tpu.matmul %26, %27, %cst_25 {dimension_numbers = #tpu.dot_dimension_numbers<[1], [0], [0], [1], [0, 0, 1, 1], [], []>} : vector<8x128xf32>, vector<128x64xf32>, vector<8x64xf32> -> vector<8x64xf32>
    %c0_26 = arith.constant 0 : index
    %c0_27 = arith.constant 0 : index
    %29 = vector.load %arg10[%c0_26, %c0_27] : memref<1x64xf32, #tpu.memory_space<vmem>>, vector<1x64xf32>
    %30 = vector.broadcast %29 : vector<1x64xf32> to vector<8x64xf32>
    %31 = arith.addf %28, %30 : vector<8x64xf32>
    %cst_28 = arith.constant 0.000000e+00 : f32
    %32 = vector.broadcast %cst_28 : f32 to vector<8x64xf32>
    %33 = arith.maximumf %31, %32 : vector<8x64xf32>
    %c0_29 = arith.constant 0 : index
    %c0_30 = arith.constant 0 : index
    %34 = vector.load %arg11[%c0_29, %c0_30] : memref<64x16xf32, #tpu.memory_space<vmem>>, vector<64x16xf32>
    %cst_31 = arith.constant dense<0.000000e+00> : vector<8x16xf32>
    %35 = tpu.matmul %33, %34, %cst_31 {dimension_numbers = #tpu.dot_dimension_numbers<[1], [0], [0], [1], [0, 0, 1, 1], [], []>} : vector<8x64xf32>, vector<64x16xf32>, vector<8x16xf32> -> vector<8x16xf32>
    %c0_32 = arith.constant 0 : index
    %c0_33 = arith.constant 0 : index
    %36 = vector.load %arg12[%c0_32, %c0_33] : memref<1x16xf32, #tpu.memory_space<vmem>>, vector<1x16xf32>
    %37 = vector.broadcast %36 : vector<1x16xf32> to vector<8x16xf32>
    %38 = arith.addf %35, %37 : vector<8x16xf32>
    %cst_34 = arith.constant 2.000000e+01 : f32
    %39 = vector.broadcast %cst_34 : f32 to vector<8x16xf32>
    %40 = arith.minimumf %38, %39 : vector<8x16xf32>
    %cst_35 = arith.constant 2.000000e+01 : f32
    %41 = vector.broadcast %cst_35 : f32 to vector<8x16xf32>
    %42 = arith.cmpf ogt, %38, %41 : vector<8x16xf32>
    %43 = math.exp %40 : vector<8x16xf32>
    %44 = math.log1p %43 : vector<8x16xf32>
    %45 = arith.select %42, %38, %44 : vector<8x16xi1>, vector<8x16xf32>
    %c0_36 = arith.constant 0 : index
    %c0_37 = arith.constant 0 : index
    %46 = vector.load %arg13[%c0_36, %c0_37] : memref<32x64xf32, #tpu.memory_space<vmem>>, vector<32x64xf32>
    %cst_38 = arith.constant dense<0.000000e+00> : vector<8x64xf32>
    %47 = tpu.matmul %0, %46, %cst_38 {dimension_numbers = #tpu.dot_dimension_numbers<[1], [0], [0], [1], [0, 0, 1, 1], [], []>} : vector<8x32xf32>, vector<32x64xf32>, vector<8x64xf32> -> vector<8x64xf32>
    %c0_39 = arith.constant 0 : index
    %c0_40 = arith.constant 0 : index
    %48 = vector.load %arg14[%c0_39, %c0_40] : memref<1x64xf32, #tpu.memory_space<vmem>>, vector<1x64xf32>
    %49 = vector.broadcast %48 : vector<1x64xf32> to vector<8x64xf32>
    %50 = arith.addf %47, %49 : vector<8x64xf32>
    %cst_41 = arith.constant 0.000000e+00 : f32
    %51 = vector.broadcast %cst_41 : f32 to vector<8x64xf32>
    %52 = arith.maximumf %50, %51 : vector<8x64xf32>
    %c0_42 = arith.constant 0 : index
    %c0_43 = arith.constant 0 : index
    %53 = vector.load %arg15[%c0_42, %c0_43] : memref<64x32xf32, #tpu.memory_space<vmem>>, vector<64x32xf32>
    %cst_44 = arith.constant dense<0.000000e+00> : vector<8x32xf32>
    %54 = tpu.matmul %52, %53, %cst_44 {dimension_numbers = #tpu.dot_dimension_numbers<[1], [0], [0], [1], [0, 0, 1, 1], [], []>} : vector<8x64xf32>, vector<64x32xf32>, vector<8x32xf32> -> vector<8x32xf32>
    %c0_45 = arith.constant 0 : index
    %c0_46 = arith.constant 0 : index
    %55 = vector.load %arg16[%c0_45, %c0_46] : memref<1x32xf32, #tpu.memory_space<vmem>>, vector<1x32xf32>
    %56 = vector.broadcast %55 : vector<1x32xf32> to vector<8x32xf32>
    %57 = arith.addf %54, %56 : vector<8x32xf32>
    %cst_47 = arith.constant 0.000000e+00 : f32
    %58 = vector.broadcast %cst_47 : f32 to vector<8x32xf32>
    %59 = arith.maximumf %57, %58 : vector<8x32xf32>
    %c0_48 = arith.constant 0 : index
    %c0_49 = arith.constant 0 : index
    %60 = vector.load %arg17[%c0_48, %c0_49] : memref<32x16xf32, #tpu.memory_space<vmem>>, vector<32x16xf32>
    %cst_50 = arith.constant dense<0.000000e+00> : vector<8x16xf32>
    %61 = tpu.matmul %59, %60, %cst_50 {dimension_numbers = #tpu.dot_dimension_numbers<[1], [0], [0], [1], [0, 0, 1, 1], [], []>} : vector<8x32xf32>, vector<32x16xf32>, vector<8x16xf32> -> vector<8x16xf32>
    %c0_51 = arith.constant 0 : index
    %c0_52 = arith.constant 0 : index
    %62 = vector.load %arg18[%c0_51, %c0_52] : memref<1x16xf32, #tpu.memory_space<vmem>>, vector<1x16xf32>
    %63 = vector.broadcast %62 : vector<1x16xf32> to vector<8x16xf32>
    %64 = arith.addf %61, %63 : vector<8x16xf32>
    %cst_53 = arith.constant 2.000000e+01 : f32
    %65 = vector.broadcast %cst_53 : f32 to vector<8x16xf32>
    %66 = arith.minimumf %64, %65 : vector<8x16xf32>
    %cst_54 = arith.constant 2.000000e+01 : f32
    %67 = vector.broadcast %cst_54 : f32 to vector<8x16xf32>
    %68 = arith.cmpf ogt, %64, %67 : vector<8x16xf32>
    %69 = math.exp %66 : vector<8x16xf32>
    %70 = math.log1p %69 : vector<8x16xf32>
    %71 = arith.select %68, %64, %70 : vector<8x16xi1>, vector<8x16xf32>
    %c0_55 = arith.constant 0 : index
    %c0_56 = arith.constant 0 : index
    %72 = vector.load %arg19[%c0_55, %c0_56] : memref<32x128xf32, #tpu.memory_space<vmem>>, vector<32x128xf32>
    %cst_57 = arith.constant dense<0.000000e+00> : vector<8x128xf32>
    %73 = tpu.matmul %0, %72, %cst_57 {dimension_numbers = #tpu.dot_dimension_numbers<[1], [0], [0], [1], [0, 0, 1, 1], [], []>} : vector<8x32xf32>, vector<32x128xf32>, vector<8x128xf32> -> vector<8x128xf32>
    %c0_58 = arith.constant 0 : index
    %c0_59 = arith.constant 0 : index
    %74 = vector.load %arg20[%c0_58, %c0_59] : memref<1x128xf32, #tpu.memory_space<vmem>>, vector<1x128xf32>
    %75 = vector.broadcast %74 : vector<1x128xf32> to vector<8x128xf32>
    %76 = arith.addf %73, %75 : vector<8x128xf32>
    %cst_60 = arith.constant dense<0.000000e+00> : vector<128xf32>
    %77 = vector.multi_reduction <add>, %76, %cst_60 [0] : vector<8x128xf32> to vector<128xf32>
    %78 = vector.shape_cast %77 : vector<128xf32> to vector<1x128xf32>
    %cst_61 = arith.constant 8.000000e+00 : f32
    %79 = vector.broadcast %cst_61 : f32 to vector<1x128xf32>
    %80 = arith.divf %78, %79 : vector<1x128xf32>
    %81 = vector.broadcast %80 : vector<1x128xf32> to vector<8x128xf32>
    %82 = arith.subf %76, %81 : vector<8x128xf32>
    %83 = arith.mulf %82, %82 : vector<8x128xf32>
    %cst_62 = arith.constant dense<0.000000e+00> : vector<128xf32>
    %84 = vector.multi_reduction <add>, %83, %cst_62 [0] : vector<8x128xf32> to vector<128xf32>
    %85 = vector.shape_cast %84 : vector<128xf32> to vector<1x128xf32>
    %cst_63 = arith.constant 8.000000e+00 : f32
    %86 = vector.broadcast %cst_63 : f32 to vector<1x128xf32>
    %87 = arith.divf %85, %86 : vector<1x128xf32>
    %88 = vector.broadcast %80 : vector<1x128xf32> to vector<8x128xf32>
    %89 = arith.subf %76, %88 : vector<8x128xf32>
    %cst_64 = arith.constant 9.99999974E-6 : f32
    %90 = vector.broadcast %cst_64 : f32 to vector<1x128xf32>
    %91 = arith.addf %87, %90 : vector<1x128xf32>
    %92 = math.rsqrt %91 : vector<1x128xf32>
    %93 = vector.broadcast %92 : vector<1x128xf32> to vector<8x128xf32>
    %94 = arith.mulf %89, %93 : vector<8x128xf32>
    %c0_65 = arith.constant 0 : index
    %c0_66 = arith.constant 0 : index
    %95 = vector.load %arg21[%c0_65, %c0_66] : memref<1x128xf32, #tpu.memory_space<vmem>>, vector<1x128xf32>
    %96 = vector.broadcast %95 : vector<1x128xf32> to vector<8x128xf32>
    %97 = arith.mulf %94, %96 : vector<8x128xf32>
    %c0_67 = arith.constant 0 : index
    %c0_68 = arith.constant 0 : index
    %98 = vector.load %arg22[%c0_67, %c0_68] : memref<1x128xf32, #tpu.memory_space<vmem>>, vector<1x128xf32>
    %99 = vector.broadcast %98 : vector<1x128xf32> to vector<8x128xf32>
    %100 = arith.addf %97, %99 : vector<8x128xf32>
    %cst_69 = arith.constant 0.000000e+00 : f32
    %101 = vector.broadcast %cst_69 : f32 to vector<8x128xf32>
    %102 = arith.maximumf %100, %101 : vector<8x128xf32>
    %103 = vector.shape_cast %102 : vector<8x128xf32> to vector<1x8x128xf32>
    %104 = vector.shape_cast %103 : vector<1x8x128xf32> to vector<1x8x128xf32>
    %105 = vector.broadcast %104 : vector<1x8x128xf32> to vector<16x8x128xf32>
    %106 = vector.shape_cast %105 : vector<16x8x128xf32> to vector<128x128xf32>
    %c0_70 = arith.constant 0 : index
    %c0_71 = arith.constant 0 : index
    %107 = vector.load %arg27[%c0_70, %c0_71] : memref<128x128xf32, #tpu.memory_space<vmem>>, vector<128x128xf32>
    %108 = arith.mulf %106, %107 : vector<128x128xf32>
    %c0_72 = arith.constant 0 : index
    %c0_73 = arith.constant 0 : index
    %109 = vector.load %arg23[%c0_72, %c0_73] : memref<128x64xf32, #tpu.memory_space<vmem>>, vector<128x64xf32>
    %cst_74 = arith.constant dense<0.000000e+00> : vector<128x64xf32>
    %110 = tpu.matmul %108, %109, %cst_74 {dimension_numbers = #tpu.dot_dimension_numbers<[1], [0], [0], [1], [0, 0, 1, 1], [], []>} : vector<128x128xf32>, vector<128x64xf32>, vector<128x64xf32> -> vector<128x64xf32>
    %c0_75 = arith.constant 0 : index
    %c0_76 = arith.constant 0 : index
    %111 = vector.load %arg24[%c0_75, %c0_76] : memref<1x64xf32, #tpu.memory_space<vmem>>, vector<1x64xf32>
    %112 = vector.broadcast %111 : vector<1x64xf32> to vector<128x64xf32>
    %113 = arith.addf %110, %112 : vector<128x64xf32>
    %114 = vector.shape_cast %113 : vector<128x64xf32> to vector<16x8x64xf32>
    %cst_77 = arith.constant dense<0.000000e+00> : vector<16x64xf32>
    %115 = vector.multi_reduction <add>, %114, %cst_77 [1] : vector<16x8x64xf32> to vector<16x64xf32>
    %116 = vector.shape_cast %115 : vector<16x64xf32> to vector<16x1x64xf32>
    %cst_78 = arith.constant 8.000000e+00 : f32
    %117 = vector.broadcast %cst_78 : f32 to vector<16x1x64xf32>
    %118 = arith.divf %116, %117 : vector<16x1x64xf32>
    %119 = vector.broadcast %118 : vector<16x1x64xf32> to vector<16x8x64xf32>
    %120 = arith.subf %114, %119 : vector<16x8x64xf32>
    %121 = arith.mulf %120, %120 : vector<16x8x64xf32>
    %cst_79 = arith.constant dense<0.000000e+00> : vector<16x64xf32>
    %122 = vector.multi_reduction <add>, %121, %cst_79 [1] : vector<16x8x64xf32> to vector<16x64xf32>
    %123 = vector.shape_cast %122 : vector<16x64xf32> to vector<16x1x64xf32>
    %cst_80 = arith.constant 8.000000e+00 : f32
    %124 = vector.broadcast %cst_80 : f32 to vector<16x1x64xf32>
    %125 = arith.divf %123, %124 : vector<16x1x64xf32>
    %126 = vector.broadcast %118 : vector<16x1x64xf32> to vector<16x8x64xf32>
    %127 = arith.subf %114, %126 : vector<16x8x64xf32>
    %cst_81 = arith.constant 9.99999974E-6 : f32
    %128 = vector.broadcast %cst_81 : f32 to vector<16x1x64xf32>
    %129 = arith.addf %125, %128 : vector<16x1x64xf32>
    %130 = math.rsqrt %129 : vector<16x1x64xf32>
    %131 = vector.broadcast %130 : vector<16x1x64xf32> to vector<16x8x64xf32>
    %132 = arith.mulf %127, %131 : vector<16x8x64xf32>
    %c0_82 = arith.constant 0 : index
    %c0_83 = arith.constant 0 : index
    %133 = vector.load %arg25[%c0_82, %c0_83] : memref<1x64xf32, #tpu.memory_space<vmem>>, vector<1x64xf32>
    %134 = vector.shape_cast %133 : vector<1x64xf32> to vector<1x1x64xf32>
    %135 = vector.broadcast %134 : vector<1x1x64xf32> to vector<16x8x64xf32>
    %136 = arith.mulf %132, %135 : vector<16x8x64xf32>
    %c0_84 = arith.constant 0 : index
    %c0_85 = arith.constant 0 : index
    %137 = vector.load %arg26[%c0_84, %c0_85] : memref<1x64xf32, #tpu.memory_space<vmem>>, vector<1x64xf32>
    %138 = vector.shape_cast %137 : vector<1x64xf32> to vector<1x1x64xf32>
    %139 = vector.broadcast %138 : vector<1x1x64xf32> to vector<16x8x64xf32>
    %140 = arith.addf %136, %139 : vector<16x8x64xf32>
    %cst_86 = arith.constant 0.000000e+00 : f32
    %141 = vector.broadcast %cst_86 : f32 to vector<16x8x64xf32>
    %142 = arith.maximumf %140, %141 : vector<16x8x64xf32>
    %143 = vector.shape_cast %142 : vector<16x8x64xf32> to vector<128x64xf32>
    %c0_87 = arith.constant 0 : index
    %c0_88 = arith.constant 0 : index
    %144 = vector.load %arg28[%c0_87, %c0_88] : memref<128x64xf32, #tpu.memory_space<vmem>>, vector<128x64xf32>
    %145 = arith.mulf %143, %144 : vector<128x64xf32>
    %c0_89 = arith.constant 0 : index
    %c0_90 = arith.constant 0 : index
    %146 = vector.load %arg5[%c0_89, %c0_90] : memref<64x16xf32, #tpu.memory_space<vmem>>, vector<64x16xf32>
    %cst_91 = arith.constant dense<0.000000e+00> : vector<128x16xf32>
    %147 = tpu.matmul %145, %146, %cst_91 {dimension_numbers = #tpu.dot_dimension_numbers<[1], [0], [0], [1], [0, 0, 1, 1], [], []>} : vector<128x64xf32>, vector<64x16xf32>, vector<128x16xf32> -> vector<128x16xf32>
    %c0_92 = arith.constant 0 : index
    %c0_93 = arith.constant 0 : index
    %148 = vector.load %arg6[%c0_92, %c0_93] : memref<1x16xf32, #tpu.memory_space<vmem>>, vector<1x16xf32>
    %149 = vector.broadcast %148 : vector<1x16xf32> to vector<128x16xf32>
    %150 = arith.addf %147, %149 : vector<128x16xf32>
    %151 = vector.shape_cast %150 : vector<128x16xf32> to vector<16x8x16xf32>
    %c0_94 = arith.constant 0 : index
    %c0_95 = arith.constant 0 : index
    %c0_96 = arith.constant 0 : index
    %152 = vector.load %arg30[%c0_94, %c0_95, %c0_96] : memref<16x8x16xf32, #tpu.memory_space<vmem>>, vector<16x8x16xf32>
    tpu.vector_store %arg30[%c0_94, %c0_95, %c0_96], %151 {strides = array<i32>} : memref<16x8x16xf32, #tpu.memory_space<vmem>>, vector<16x8x16xf32>,
    %cst_97 = arith.constant dense<0.000000e+00> : vector<8x16xf32>
    %153 = vector.multi_reduction <add>, %151, %cst_97 [0] : vector<16x8x16xf32> to vector<8x16xf32>
    %cst_98 = arith.constant 1.600000e+01 : f32
    %154 = vector.broadcast %cst_98 : f32 to vector<8x16xf32>
    %155 = arith.divf %153, %154 : vector<8x16xf32>
    %156 = vector.shape_cast %155 : vector<8x16xf32> to vector<1x8x16xf32>
    %157 = vector.broadcast %156 : vector<1x8x16xf32> to vector<16x8x16xf32>
    %158 = arith.subf %151, %157 : vector<16x8x16xf32>
    %159 = arith.mulf %158, %158 : vector<16x8x16xf32>
    %cst_99 = arith.constant dense<0.000000e+00> : vector<8x16xf32>
    %160 = vector.multi_reduction <add>, %159, %cst_99 [0] : vector<16x8x16xf32> to vector<8x16xf32>
    %cst_100 = arith.constant 0.0666666701 : f32
    %161 = vector.broadcast %cst_100 : f32 to vector<8x16xf32>
    %162 = arith.mulf %160, %161 : vector<8x16xf32>
    %cst_101 = arith.constant 0.000000e+00 : f32
    %163 = vector.broadcast %cst_101 : f32 to vector<8x16xf32>
    %164 = arith.maximumf %162, %163 : vector<8x16xf32>
    %165 = arith.addf %71, %164 : vector<8x16xf32>
    %166 = math.sqrt %165 : vector<8x16xf32>
    %cst_102 = arith.constant 1.960000e+00 : f32
    %167 = vector.broadcast %cst_102 : f32 to vector<8x16xf32>
    %168 = arith.mulf %167, %166 : vector<8x16xf32>
    %169 = arith.subf %19, %168 : vector<8x16xf32>
    %cst_103 = arith.constant 1.960000e+00 : f32
    %170 = vector.broadcast %cst_103 : f32 to vector<8x16xf32>
    %171 = arith.mulf %170, %166 : vector<8x16xf32>
    %172 = arith.addf %19, %171 : vector<8x16xf32>
    %173 = tpu.concatenate %19, %45, %71, %155, %164, %165, %169, %172 in 1 : vector<8x16xf32>, vector<8x16xf32>, vector<8x16xf32>, vector<8x16xf32>, vector<8x16xf32>, vector<8x16xf32>, vector<8x16xf32>, vector<8x16xf32> -> vector<8x128xf32>
    %c0_104 = arith.constant 0 : index
    %c0_105 = arith.constant 0 : index
    %174 = vector.load %arg29[%c0_104, %c0_105] : memref<8x128xf32, #tpu.memory_space<vmem>>, vector<8x128xf32>
    tpu.vector_store %arg29[%c0_104, %c0_105], %173 {strides = array<i32>} : memref<8x128xf32, #tpu.memory_space<vmem>>, vector<8x128xf32>,
    return
  }
}

</mosaic_0001>

<llo_original>
// kernel: tpu_custom_call.1
$region0: #{tpu_custom_call.1}
  #allocation0 [shape = 'u32[]', space=smem, size = 0x4, offset = 0x4, fixed_abs, tag = 'smem constant byte address 0x4 - core index']
  #allocation1 [shape = 'u32[144,128]{1,0:T(1,128)}', space=vmem, size = 0x12000, scoped, tag = 'internal scratch']
  %s0 = inlined_call_operand.smem [shape: u32[31], index: -1, kind: input, shape index: {}]
  %s1 = sld [smem:[%s0]]
  %s2 = scalar_lea.smem %s0, 1
  %s3 = sld [smem:[%s2]]
  %s4 = scalar_lea.smem %s0, 2
  %s5 = sld [smem:[%s4]]
  %s6 = scalar_lea.smem %s0, 3
  %s7 = sld [smem:[%s6]]
  %s8 = scalar_lea.smem %s0, 4
  %s9 = sld [smem:[%s8]]
  %s10 = scalar_lea.smem %s0, 5
  %s11 = sld [smem:[%s10]]
  %s12 = scalar_lea.smem %s0, 6
  %s13 = sld [smem:[%s12]]
  %s14 = scalar_lea.smem %s0, 7
  %s15 = sld [smem:[%s14]]
  %s16 = scalar_lea.smem %s0, 8
  %s17 = sld [smem:[%s16]]
  %s18 = scalar_lea.smem %s0, 9
  %s19 = sld [smem:[%s18]]
  %s20 = scalar_lea.smem %s0, 10
  %s21 = sld [smem:[%s20]]
  %s22 = scalar_lea.smem %s0, 11
  %s23 = sld [smem:[%s22]]
  %s24 = scalar_lea.smem %s0, 12
  %s25 = sld [smem:[%s24]]
  %s26 = scalar_lea.smem %s0, 13
  %s27 = sld [smem:[%s26]]
  %s28 = scalar_lea.smem %s0, 14
  %s29 = sld [smem:[%s28]]
  %s30 = scalar_lea.smem %s0, 15
  %s31 = sld [smem:[%s30]]
  %s32 = scalar_lea.smem %s0, 16
  %s33 = sld [smem:[%s32]]
  %s34 = scalar_lea.smem %s0, 17
  %s35 = sld [smem:[%s34]]
  %s36 = scalar_lea.smem %s0, 18
  %s37 = sld [smem:[%s36]]
  %s38 = scalar_lea.smem %s0, 19
  %s39 = sld [smem:[%s38]]
  %s40 = scalar_lea.smem %s0, 20
  %s41 = sld [smem:[%s40]]
  %s42 = scalar_lea.smem %s0, 21
  %s43 = sld [smem:[%s42]]
  %s44 = scalar_lea.smem %s0, 22
  %s45 = sld [smem:[%s44]]
  %s46 = scalar_lea.smem %s0, 23
  %s47 = sld [smem:[%s46]]
  %s48 = scalar_lea.smem %s0, 24
  %s49 = sld [smem:[%s48]]
  %s50 = scalar_lea.smem %s0, 25
  %s51 = sld [smem:[%s50]]
  %s52 = scalar_lea.smem %s0, 26
  %s53 = sld [smem:[%s52]]
  %s54 = scalar_lea.smem %s0, 27
  %s55 = sld [smem:[%s54]]
  %s56 = scalar_lea.smem %s0, 28
  %s57 = sld [smem:[%s56]]
  %s58 = scalar_lea.smem %s0, 29
  %s59 = sld [smem:[%s58]]
  %s60 = scalar_lea.smem %s0, 30
  %s61 = sld [smem:[%s60]]
  %62 = xla_tuple %s59, %s61
  %s63 = sld [smem:[#allocation0]]
  $region134: #{tpu_custom_call.1} parent=0
    _
  %s65 = ssub.s32 1, %s63
  %s66 = scalar_select 0, %s65, %s63
  $region1: #{tpu_custom_call.1} parent=0
    #allocation2 [shape = 'u8[4096]{0}', space=vmem, size = 0x1000, scoped, tag = 'output window, operand 0, single buffered']
    #allocation3 [shape = 's32[1]{0}', space=sflag, size = 0x4, scoped, tag = 'scoped memory for tpu_custom_call.1']
    #allocation4 [shape = 'u8[65536]{0}', space=vmem, size = 0x10000, scoped, tag = 'output window, operand 1, single buffered']
    #allocation5 [shape = 's32[1]{0}', space=sflag, size = 0x4, scoped, tag = 'scoped memory for tpu_custom_call.1']
    %67 = vsyncpa [#allocation3], 0
    %68 = vsyncpa [#allocation5], 0
    // Predicated region
    $region2: #{tpu_custom_call.1} parent=1 // pred_check
      _
    $region3: #{tpu_custom_call.1} parent=1 // pred_check_branch
      %70 = sbr.rel (0) target = $region5
    $region4: #{tpu_custom_call.1} parent=1 // pred_region
      _
    $region5: #{tpu_custom_call.1} parent=1 // pred_fallthru
      _
    // Predicated region
    $region6: #{tpu_custom_call.1} parent=1 // pred_check
      _
    $region7: #{tpu_custom_call.1} parent=1 // pred_check_branch
      %72 = sbr.rel (0) target = $region9
    $region8: #{tpu_custom_call.1} parent=1 // pred_region
      _
    $region9: #{tpu_custom_call.1} parent=1 // pred_fallthru
      _
    // Predicated region
    $region10: #{tpu_custom_call.1} parent=1 // pred_check
      _
    $region11: #{tpu_custom_call.1} parent=1 // pred_check_branch
      %74 = sbr.rel (0) target = $region13
    $region12: #{tpu_custom_call.1} parent=1 // pred_region
      _
    $region13: #{tpu_custom_call.1} parent=1 // pred_fallthru
      _
    // Predicated region
    $region14: #{tpu_custom_call.1} parent=1 // pred_check
      _
    $region15: #{tpu_custom_call.1} parent=1 // pred_check_branch
      %76 = sbr.rel (0) target = $region17
    $region16: #{tpu_custom_call.1} parent=1 // pred_region
      _
    $region17: #{tpu_custom_call.1} parent=1 // pred_fallthru
      _
    // Predicated region
    $region18: #{tpu_custom_call.1} parent=1 // pred_check
      _
    $region19: #{tpu_custom_call.1} parent=1 // pred_check_branch
      %78 = sbr.rel (0) target = $region21
    $region20: #{tpu_custom_call.1} parent=1 // pred_region
      _
    $region21: #{tpu_custom_call.1} parent=1 // pred_fallthru
      _
    // Predicated region
    $region22: #{tpu_custom_call.1} parent=1 // pred_check
      _
    $region23: #{tpu_custom_call.1} parent=1 // pred_check_branch
      %80 = sbr.rel (0) target = $region25
    $region24: #{tpu_custom_call.1} parent=1 // pred_region
      _
    $region25: #{tpu_custom_call.1} parent=1 // pred_fallthru
      _
    // Predicated region
    $region26: #{tpu_custom_call.1} parent=1 // pred_check
      _
    $region27: #{tpu_custom_call.1} parent=1 // pred_check_branch
      %82 = sbr.rel (0) target = $region29
    $region28: #{tpu_custom_call.1} parent=1 // pred_region
      _
    $region29: #{tpu_custom_call.1} parent=1 // pred_fallthru
      _
    // Predicated region
    $region30: #{tpu_custom_call.1} parent=1 // pred_check
      _
    $region31: #{tpu_custom_call.1} parent=1 // pred_check_branch
      %84 = sbr.rel (0) target = $region33
    $region32: #{tpu_custom_call.1} parent=1 // pred_region
      _
    $region33: #{tpu_custom_call.1} parent=1 // pred_fallthru
      _
    // Predicated region
    $region34: #{tpu_custom_call.1} parent=1 // pred_check
      _
    $region35: #{tpu_custom_call.1} parent=1 // pred_check_branch
      %86 = sbr.rel (0) target = $region37
    $region36: #{tpu_custom_call.1} parent=1 // pred_region
      _
    $region37: #{tpu_custom_call.1} parent=1 // pred_fallthru
      _
    // Predicated region
    $region38: #{tpu_custom_call.1} parent=1 // pred_check
      _
    $region39: #{tpu_custom_call.1} parent=1 // pred_check_branch
      %88 = sbr.rel (0) target = $region41
    $region40: #{tpu_custom_call.1} parent=1 // pred_region
      _
    $region41: #{tpu_custom_call.1} parent=1 // pred_fallthru
      _
    // Predicated region
    $region42: #{tpu_custom_call.1} parent=1 // pred_check
      _
    $region43: #{tpu_custom_call.1} parent=1 // pred_check_branch
      %90 = sbr.rel (0) target = $region45
    $region44: #{tpu_custom_call.1} parent=1 // pred_region
      _
    $region45: #{tpu_custom_call.1} parent=1 // pred_fallthru
      _
    // Predicated region
    $region46: #{tpu_custom_call.1} parent=1 // pred_check
      _
    $region47: #{tpu_custom_call.1} parent=1 // pred_check_branch
      %92 = sbr.rel (0) target = $region49
    $region48: #{tpu_custom_call.1} parent=1 // pred_region
      _
    $region49: #{tpu_custom_call.1} parent=1 // pred_fallthru
      _
    // Predicated region
    $region50: #{tpu_custom_call.1} parent=1 // pred_check
      _
    $region51: #{tpu_custom_call.1} parent=1 // pred_check_branch
      %94 = sbr.rel (0) target = $region53
    $region52: #{tpu_custom_call.1} parent=1 // pred_region
      _
    $region53: #{tpu_custom_call.1} parent=1 // pred_fallthru
      _
    // Predicated region
    $region54: #{tpu_custom_call.1} parent=1 // pred_check
      _
    $region55: #{tpu_custom_call.1} parent=1 // pred_check_branch
      %96 = sbr.rel (0) target = $region57
    $region56: #{tpu_custom_call.1} parent=1 // pred_region
      _
    $region57: #{tpu_custom_call.1} parent=1 // pred_fallthru
      _
    // Predicated region
    $region58: #{tpu_custom_call.1} parent=1 // pred_check
      _
    $region59: #{tpu_custom_call.1} parent=1 // pred_check_branch
      %98 = sbr.rel (0) target = $region61
    $region60: #{tpu_custom_call.1} parent=1 // pred_region
      _
    $region61: #{tpu_custom_call.1} parent=1 // pred_fallthru
      _
    // Predicated region
    $region62: #{tpu_custom_call.1} parent=1 // pred_check
      _
    $region63: #{tpu_custom_call.1} parent=1 // pred_check_branch
      %100 = sbr.rel (0) target = $region65
    $region64: #{tpu_custom_call.1} parent=1 // pred_region
      _
    $region65: #{tpu_custom_call.1} parent=1 // pred_fallthru
      _
    // Predicated region
    $region66: #{tpu_custom_call.1} parent=1 // pred_check
      _
    $region67: #{tpu_custom_call.1} parent=1 // pred_check_branch
      %102 = sbr.rel (0) target = $region69
    $region68: #{tpu_custom_call.1} parent=1 // pred_region
      _
    $region69: #{tpu_custom_call.1} parent=1 // pred_fallthru
      _
    // Predicated region
    $region70: #{tpu_custom_call.1} parent=1 // pred_check
      _
    $region71: #{tpu_custom_call.1} parent=1 // pred_check_branch
      %104 = sbr.rel (0) target = $region73
    $region72: #{tpu_custom_call.1} parent=1 // pred_region
      _
    $region73: #{tpu_custom_call.1} parent=1 // pred_fallthru
      _
    // Predicated region
    $region74: #{tpu_custom_call.1} parent=1 // pred_check
      _
    $region75: #{tpu_custom_call.1} parent=1 // pred_check_branch
      %106 = sbr.rel (0) target = $region77
    $region76: #{tpu_custom_call.1} parent=1 // pred_region
      _
    $region77: #{tpu_custom_call.1} parent=1 // pred_fallthru
      _
    // Predicated region
    $region78: #{tpu_custom_call.1} parent=1 // pred_check
      _
    $region79: #{tpu_custom_call.1} parent=1 // pred_check_branch
      %108 = sbr.rel (0) target = $region81
    $region80: #{tpu_custom_call.1} parent=1 // pred_region
      _
    $region81: #{tpu_custom_call.1} parent=1 // pred_fallthru
      _
    // Predicated region
    $region82: #{tpu_custom_call.1} parent=1 // pred_check
      _
    $region83: #{tpu_custom_call.1} parent=1 // pred_check_branch
      %110 = sbr.rel (0) target = $region85
    $region84: #{tpu_custom_call.1} parent=1 // pred_region
      _
    $region85: #{tpu_custom_call.1} parent=1 // pred_fallthru
      _
    // Predicated region
    $region86: #{tpu_custom_call.1} parent=1 // pred_check
      _
    $region87: #{tpu_custom_call.1} parent=1 // pred_check_branch
      %112 = sbr.rel (0) target = $region89
    $region88: #{tpu_custom_call.1} parent=1 // pred_region
      _
    $region89: #{tpu_custom_call.1} parent=1 // pred_fallthru
      _
    // Predicated region
    $region90: #{tpu_custom_call.1} parent=1 // pred_check
      _
    $region91: #{tpu_custom_call.1} parent=1 // pred_check_branch
      %114 = sbr.rel (0) target = $region93
    $region92: #{tpu_custom_call.1} parent=1 // pred_region
      _
    $region93: #{tpu_custom_call.1} parent=1 // pred_fallthru
      _
    // Predicated region
    $region94: #{tpu_custom_call.1} parent=1 // pred_check
      _
    $region95: #{tpu_custom_call.1} parent=1 // pred_check_branch
      %116 = sbr.rel (0) target = $region97
    $region96: #{tpu_custom_call.1} parent=1 // pred_region
      _
    $region97: #{tpu_custom_call.1} parent=1 // pred_fallthru
      _
    // Predicated region
    $region98: #{tpu_custom_call.1} parent=1 // pred_check
      _
    $region99: #{tpu_custom_call.1} parent=1 // pred_check_branch
      %118 = sbr.rel (0) target = $region101
    $region100: #{tpu_custom_call.1} parent=1 // pred_region
      _
    $region101: #{tpu_custom_call.1} parent=1 // pred_fallthru
      _
    // Predicated region
    $region102: #{tpu_custom_call.1} parent=1 // pred_check
      _
    $region103: #{tpu_custom_call.1} parent=1 // pred_check_branch
      %120 = sbr.rel (0) target = $region105
    $region104: #{tpu_custom_call.1} parent=1 // pred_region
      _
    $region105: #{tpu_custom_call.1} parent=1 // pred_fallthru
      _
    // Predicated region
    $region106: #{tpu_custom_call.1} parent=1 // pred_check
      _
    $region107: #{tpu_custom_call.1} parent=1 // pred_check_branch
      %122 = sbr.rel (0) target = $region109
    $region108: #{tpu_custom_call.1} parent=1 // pred_region
      _
    $region109: #{tpu_custom_call.1} parent=1 // pred_fallthru
      _
    // Predicated region
    $region110: #{tpu_custom_call.1} parent=1 // pred_check
      _
    $region111: #{tpu_custom_call.1} parent=1 // pred_check_branch
      %124 = sbr.rel (0) target = $region113
    $region112: #{tpu_custom_call.1} parent=1 // pred_region
      _
    $region113: #{tpu_custom_call.1} parent=1 // pred_fallthru
      _
    // Predicated region
    $region114: #{tpu_custom_call.1} parent=1 // pred_check
      _
    $region115: #{tpu_custom_call.1} parent=1 // pred_check_branch
      %126 = sbr.rel (0) target = $region117
    $region116: #{tpu_custom_call.1} parent=1 // pred_region
      _
    $region117: #{tpu_custom_call.1} parent=1 // pred_fallthru
      _
    %v127 = vld [vmem:[%s1] sm:$0xff]
    %v128 = vld [vmem:[%s3] sm:$0xff]
    %v129 = vld [vmem:[%s3 + $0x8] sm:$0xff]
    %v130 = vld [vmem:[%s3 + $0x10] sm:$0xff]
    %v131 = vld [vmem:[%s3 + $0x18] sm:$0xff]
    %v132 = vld [vmem:[%s5] sm:$0x1]
    %v134 = vlaneseq
    %v135 = vshrl.u32 %v134, 7
    %v136 = vsub.s32 0, %v135
    %v137 = vrot.slane %v132, %v136
    %vm139 = vcmask 261120
    %v141 = vsel %vm139, %v127, 0
    %143 = vmatprep.subr.mxu0 0.0
    %144 = vmatpush1.msra.mxu0 %v128
    %145 = vmatprep.subr.mxu0 0.0
    %146 = vmatpush1.msra.mxu0 %v129
    %147 = vmatprep.subr.mxu0 0.0
    %148 = vmatpush1.msra.mxu0 %v130
    %149 = vmatprep.subr.mxu0 0.0
    %150 = vmatpush1.msra.mxu0 %v131
    %151 = vmatprep.subr.mxu0 0.0
    %152 = vmatpush1.msra.mxu0 0.0
    %153 = vmatprep.subr.mxu0 0.0
    %154 = vmatpush1.msra.mxu0 0.0
    %155 = vmatprep.subr.mxu0 0.0
    %156 = vmatpush1.msra.mxu0 0.0
    %157 = vmatprep.subr.mxu0 0.0
    %158 = vmatpush1.msra.mxu0 0.0
    %159 = vmatprep.subr.mxu0 0.0
    %160 = vmatpush1.msra.mxu0 0.0
    %161 = vmatprep.subr.mxu0 0.0
    %162 = vmatpush1.msra.mxu0 0.0
    %163 = vmatprep.subr.mxu0 0.0
    %164 = vmatpush1.msra.mxu0 0.0
    %165 = vmatprep.subr.mxu0 0.0
    %166 = vmatpush1.msra.mxu0 0.0
    %167 = vmatprep.subr.mxu0 0.0
    %168 = vmatpush1.msra.mxu0 0.0
    %169 = vmatprep.subr.mxu0 0.0
    %170 = vmatpush1.msra.mxu0 0.0
    %171 = vmatprep.subr.mxu0 0.0
    %172 = vmatpush1.msra.mxu0 0.0
    %173 = vmatprep.subr.mxu0 0.0
    %174 = vmatpush1.msra.mxu0 0.0
    %175 = vmatprep.subr.mxu0 0.0
    %176 = vmatpush1.msra.mxu0 0.0
    %177 = vmatprep.subr.mxu0 0.0
    %178 = vmatpush1.msra.mxu0 0.0
    %179 = vmatprep.subr.mxu0 0.0
    %180 = vmatpush1.msra.mxu0 0.0
    %181 = vmatprep.subr.mxu0 0.0
    %182 = vmatpush1.msra.mxu0 0.0
    %183 = vmatprep.subr.mxu0 0.0
    %184 = vmatpush1.msra.mxu0 0.0
    %185 = vmatprep.subr.mxu0 0.0
    %186 = vmatpush1.msra.mxu0 0.0
    %187 = vmatprep.subr.mxu0 0.0
    %188 = vmatpush1.msra.mxu0 0.0
    %189 = vmatprep.subr.mxu0 0.0
    %190 = vmatpush1.msra.mxu0 0.0
    %191 = vmatprep.subr.mxu0 0.0
    %192 = vmatpush1.msra.mxu0 0.0
    %193 = vmatprep.subr.mxu0 0.0
    %194 = vmatpush1.msra.mxu0 0.0
    %195 = vmatprep.subr.mxu0 0.0
    %196 = vmatpush1.msra.mxu0 0.0
    %197 = vmatprep.subr.mxu0 0.0
    %198 = vmatpush1.msra.mxu0 0.0
    %199 = vmatprep.subr.mxu0 0.0
    %200 = vmatpush1.msra.mxu0 0.0
    %201 = vmatprep.subr.mxu0 0.0
    %202 = vmatpush1.msra.mxu0 0.0
    %203 = vmatprep.subr.mxu0 0.0
    %204 = vmatpush1.msra.mxu0 0.0
    %205 = vmatprep.subr.mxu0 0.0
    %206 = vmatpush1.msra.mxu0 0.0
    %207 = vmatprep.mubr.f32.mxu0 0.0
    %208 = vmatmul.mubr.f32.gmra.mrb[0].mxu0 %v141
    %v209 = vpop.f32.mrb[0].mxu0
    %v210 = vadd.f32 %v137, %v209
    %v211 = vpop.f32.mrb[0].mxu0
    %212 = vdwg.mxu0
    %v213 = vmax.f32 %v210, 0.0
    %v214 = vld [vmem:[%s7] sm:$0xff]
    %v215 = vld [vmem:[%s7 + $0x8] sm:$0xff]
    %v216 = vld [vmem:[%s7 + $0x10] sm:$0xff]
    %v217 = vld [vmem:[%s7 + $0x18] sm:$0xff]
    %v218 = vld [vmem:[%s7 + $0x20] sm:$0xff]
    %v219 = vld [vmem:[%s7 + $0x28] sm:$0xff]
    %v220 = vld [vmem:[%s7 + $0x30] sm:$0xff]
    %v221 = vld [vmem:[%s7 + $0x38] sm:$0xff]
    %v222 = vld [vmem:[%s7 + $0x40] sm:$0xff]
    %v223 = vld [vmem:[%s7 + $0x48] sm:$0xff]
    %v224 = vld [vmem:[%s7 + $0x50] sm:$0xff]
    %v225 = vld [vmem:[%s7 + $0x58] sm:$0xff]
    %v226 = vld [vmem:[%s7 + $0x60] sm:$0xff]
    %v227 = vld [vmem:[%s7 + $0x68] sm:$0xff]
    %v228 = vld [vmem:[%s7 + $0x70] sm:$0xff]
    %v229 = vld [vmem:[%s7 + $0x78] sm:$0xff]
    %v230 = vld [vmem:[%s9] sm:$0x1]
    %v232 = vlaneseq
    %v233 = vshrl.u32 %v232, 7
    %v234 = vsub.s32 0, %v233
    %v235 = vrot.slane %v230, %v234
    %237 = vmatprep.subr.mxu0 0.0
    %238 = vmatpush1.msra.mxu0 %v214
    %239 = vmatprep.subr.mxu0 0.0
    %240 = vmatpush1.msra.mxu0 %v215
    %241 = vmatprep.subr.mxu0 0.0
    %242 = vmatpush1.msra.mxu0 %v216
    %243 = vmatprep.subr.mxu0 0.0
    %244 = vmatpush1.msra.mxu0 %v217
    %245 = vmatprep.subr.mxu0 0.0
    %246 = vmatpush1.msra.mxu0 %v218
    %247 = vmatprep.subr.mxu0 0.0
    %248 = vmatpush1.msra.mxu0 %v219
    %249 = vmatprep.subr.mxu0 0.0
    %250 = vmatpush1.msra.mxu0 %v220
    %251 = vmatprep.subr.mxu0 0.0
    %252 = vmatpush1.msra.mxu0 %v221
    %253 = vmatprep.subr.mxu0 0.0
    %254 = vmatpush1.msra.mxu0 %v222
    %255 = vmatprep.subr.mxu0 0.0
    %256 = vmatpush1.msra.mxu0 %v223
    %257 = vmatprep.subr.mxu0 0.0
    %258 = vmatpush1.msra.mxu0 %v224
    %259 = vmatprep.subr.mxu0 0.0
    %260 = vmatpush1.msra.mxu0 %v225
    %261 = vmatprep.subr.mxu0 0.0
    %262 = vmatpush1.msra.mxu0 %v226
    %263 = vmatprep.subr.mxu0 0.0
    %264 = vmatpush1.msra.mxu0 %v227
    %265 = vmatprep.subr.mxu0 0.0
    %266 = vmatpush1.msra.mxu0 %v228
    %267 = vmatprep.subr.mxu0 0.0
    %268 = vmatpush1.msra.mxu0 %v229
    %269 = vmatprep.subr.mxu0 0.0
    %270 = vmatpush1.msra.mxu0 0.0
    %271 = vmatprep.subr.mxu0 0.0
    %272 = vmatpush1.msra.mxu0 0.0
    %273 = vmatprep.subr.mxu0 0.0
    %274 = vmatpush1.msra.mxu0 0.0
    %275 = vmatprep.subr.mxu0 0.0
    %276 = vmatpush1.msra.mxu0 0.0
    %277 = vmatprep.subr.mxu0 0.0
    %278 = vmatpush1.msra.mxu0 0.0
    %279 = vmatprep.subr.mxu0 0.0
    %280 = vmatpush1.msra.mxu0 0.0
    %281 = vmatprep.subr.mxu0 0.0
    %282 = vmatpush1.msra.mxu0 0.0
    %283 = vmatprep.subr.mxu0 0.0
    %284 = vmatpush1.msra.mxu0 0.0
    %285 = vmatprep.subr.mxu0 0.0
    %286 = vmatpush1.msra.mxu0 0.0
    %287 = vmatprep.subr.mxu0 0.0
    %288 = vmatpush1.msra.mxu0 0.0
    %289 = vmatprep.subr.mxu0 0.0
    %290 = vmatpush1.msra.mxu0 0.0
    %291 = vmatprep.subr.mxu0 0.0
    %292 = vmatpush1.msra.mxu0 0.0
    %293 = vmatprep.subr.mxu0 0.0
    %294 = vmatpush1.msra.mxu0 0.0
    %295 = vmatprep.subr.mxu0 0.0
    %296 = vmatpush1.msra.mxu0 0.0
    %297 = vmatprep.subr.mxu0 0.0
    %298 = vmatpush1.msra.mxu0 0.0
    %299 = vmatprep.subr.mxu0 0.0
    %300 = vmatpush1.msra.mxu0 0.0
    %301 = vmatprep.mubr.f32.mxu0 0.0
    %302 = vmatmul.mubr.f32.gmra.mrb[0].mxu0 %v213
    %v303 = vpop.f32.mrb[0].mxu0
    %v304 = vadd.f32 %v235, %v303
    %v305 = vpop.f32.mrb[0].mxu0
    %306 = vdwg.mxu0
    %v307 = vmax.f32 %v304, 0.0
    %v308 = vld [vmem:[%s11] sm:$0xff]
    %v309 = vld [vmem:[%s11 + $0x8] sm:$0xff]
    %v310 = vld [vmem:[%s11 + $0x10] sm:$0xff]
    %v311 = vld [vmem:[%s11 + $0x18] sm:$0xff]
    %v312 = vld [vmem:[%s11 + $0x20] sm:$0xff]
    %v313 = vld [vmem:[%s11 + $0x28] sm:$0xff]
    %v314 = vld [vmem:[%s11 + $0x30] sm:$0xff]
    %v315 = vld [vmem:[%s11 + $0x38] sm:$0xff]
    %v316 = vld [vmem:[%s13] sm:$0x1]
    %v318 = vlaneseq
    %v319 = vshrl.u32 %v318, 7
    %v320 = vsub.s32 0, %v319
    %v321 = vrot.slane %v316, %v320
    %vm323 = vcmask 523264
    %v325 = vsel %vm323, %v307, 0
    %327 = vmatprep.subr.mxu0 0.0
    %328 = vmatpush1.msra.mxu0 %v308
    %329 = vmatprep.subr.mxu0 0.0
    %330 = vmatpush1.msra.mxu0 %v309
    %331 = vmatprep.subr.mxu0 0.0
    %332 = vmatpush1.msra.mxu0 %v310
    %333 = vmatprep.subr.mxu0 0.0
    %334 = vmatpush1.msra.mxu0 %v311
    %335 = vmatprep.subr.mxu0 0.0
    %336 = vmatpush1.msra.mxu0 %v312
    %337 = vmatprep.subr.mxu0 0.0
    %338 = vmatpush1.msra.mxu0 %v313
    %339 = vmatprep.subr.mxu0 0.0
    %340 = vmatpush1.msra.mxu0 %v314
    %341 = vmatprep.subr.mxu0 0.0
    %342 = vmatpush1.msra.mxu0 %v315
    %343 = vmatprep.subr.mxu0 0.0
    %344 = vmatpush1.msra.mxu0 0.0
    %345 = vmatprep.subr.mxu0 0.0
    %346 = vmatpush1.msra.mxu0 0.0
    %347 = vmatprep.subr.mxu0 0.0
    %348 = vmatpush1.msra.mxu0 0.0
    %349 = vmatprep.subr.mxu0 0.0
    %350 = vmatpush1.msra.mxu0 0.0
    %351 = vmatprep.subr.mxu0 0.0
    %352 = vmatpush1.msra.mxu0 0.0
    %353 = vmatprep.subr.mxu0 0.0
    %354 = vmatpush1.msra.mxu0 0.0
    %355 = vmatprep.subr.mxu0 0.0
    %356 = vmatpush1.msra.mxu0 0.0
    %357 = vmatprep.subr.mxu0 0.0
    %358 = vmatpush1.msra.mxu0 0.0
    %359 = vmatprep.subr.mxu0 0.0
    %360 = vmatpush1.msra.mxu0 0.0
    %361 = vmatprep.subr.mxu0 0.0
    %362 = vmatpush1.msra.mxu0 0.0
    %363 = vmatprep.subr.mxu0 0.0
    %364 = vmatpush1.msra.mxu0 0.0
    %365 = vmatprep.subr.mxu0 0.0
    %366 = vmatpush1.msra.mxu0 0.0
    %367 = vmatprep.subr.mxu0 0.0
    %368 = vmatpush1.msra.mxu0 0.0
    %369 = vmatprep.subr.mxu0 0.0
    %370 = vmatpush1.msra.mxu0 0.0
    %371 = vmatprep.subr.mxu0 0.0
    %372 = vmatpush1.msra.mxu0 0.0
    %373 = vmatprep.subr.mxu0 0.0
    %374 = vmatpush1.msra.mxu0 0.0
    %375 = vmatprep.subr.mxu0 0.0
    %376 = vmatpush1.msra.mxu0 0.0
    %377 = vmatprep.subr.mxu0 0.0
    %378 = vmatpush1.msra.mxu0 0.0
    %379 = vmatprep.subr.mxu0 0.0
    %380 = vmatpush1.msra.mxu0 0.0
    %381 = vmatprep.subr.mxu0 0.0
    %382 = vmatpush1.msra.mxu0 0.0
    %383 = vmatprep.subr.mxu0 0.0
    %384 = vmatpush1.msra.mxu0 0.0
    %385 = vmatprep.subr.mxu0 0.0
    %386 = vmatpush1.msra.mxu0 0.0
    %387 = vmatprep.subr.mxu0 0.0
    %388 = vmatpush1.msra.mxu0 0.0
    %389 = vmatprep.subr.mxu0 0.0
    %390 = vmatpush1.msra.mxu0 0.0
    %391 = vmatprep.mubr.f32.mxu0 0.0
    %392 = vmatmul.mubr.f32.gmra.mrb[0].mxu0 %v325
    %v393 = vpop.f32.mrb[0].mxu0
    %v394 = vadd.f32 %v321, %v393
    %v395 = vpop.f32.mrb[0].mxu0
    %396 = vdwg.mxu0
    %v397 = vld [vmem:[%s15] sm:$0xff]
    %v398 = vld [vmem:[%s15 + $0x8] sm:$0xff]
    %v399 = vld [vmem:[%s15 + $0x10] sm:$0xff]
    %v400 = vld [vmem:[%s15 + $0x18] sm:$0xff]
    %v401 = vld [vmem:[%s17] sm:$0x1]
    %v403 = vlaneseq
    %v404 = vshrl.u32 %v403, 7
    %v405 = vsub.s32 0, %v404
    %v406 = vrot.slane %v401, %v405
    %408 = vmatprep.subr.mxu0 0.0
    %409 = vmatpush1.msra.mxu0 %v397
    %410 = vmatprep.subr.mxu0 0.0
    %411 = vmatpush1.msra.mxu0 %v398
    %412 = vmatprep.subr.mxu0 0.0
    %413 = vmatpush1.msra.mxu0 %v399
    %414 = vmatprep.subr.mxu0 0.0
    %415 = vmatpush1.msra.mxu0 %v400
    %416 = vmatprep.subr.mxu0 0.0
    %417 = vmatpush1.msra.mxu0 0.0
    %418 = vmatprep.subr.mxu0 0.0
    %419 = vmatpush1.msra.mxu0 0.0
    %420 = vmatprep.subr.mxu0 0.0
    %421 = vmatpush1.msra.mxu0 0.0
    %422 = vmatprep.subr.mxu0 0.0
    %423 = vmatpush1.msra.mxu0 0.0
    %424 = vmatprep.subr.mxu0 0.0
    %425 = vmatpush1.msra.mxu0 0.0
    %426 = vmatprep.subr.mxu0 0.0
    %427 = vmatpush1.msra.mxu0 0.0
    %428 = vmatprep.subr.mxu0 0.0
    %429 = vmatpush1.msra.mxu0 0.0
    %430 = vmatprep.subr.mxu0 0.0
    %431 = vmatpush1.msra.mxu0 0.0
    %432 = vmatprep.subr.mxu0 0.0
    %433 = vmatpush1.msra.mxu0 0.0
    %434 = vmatprep.subr.mxu0 0.0
    %435 = vmatpush1.msra.mxu0 0.0
    %436 = vmatprep.subr.mxu0 0.0
    %437 = vmatpush1.msra.mxu0 0.0
    %438 = vmatprep.subr.mxu0 0.0
    %439 = vmatpush1.msra.mxu0 0.0
    %440 = vmatprep.subr.mxu0 0.0
    %441 = vmatpush1.msra.mxu0 0.0
    %442 = vmatprep.subr.mxu0 0.0
    %443 = vmatpush1.msra.mxu0 0.0
    %444 = vmatprep.subr.mxu0 0.0
    %445 = vmatpush1.msra.mxu0 0.0
    %446 = vmatprep.subr.mxu0 0.0
    %447 = vmatpush1.msra.mxu0 0.0
    %448 = vmatprep.subr.mxu0 0.0
    %449 = vmatpush1.msra.mxu0 0.0
    %450 = vmatprep.subr.mxu0 0.0
    %451 = vmatpush1.msra.mxu0 0.0
    %452 = vmatprep.subr.mxu0 0.0
    %453 = vmatpush1.msra.mxu0 0.0
    %454 = vmatprep.subr.mxu0 0.0
    %455 = vmatpush1.msra.mxu0 0.0
    %456 = vmatprep.subr.mxu0 0.0
    %457 = vmatpush1.msra.mxu0 0.0
    %458 = vmatprep.subr.mxu0 0.0
    %459 = vmatpush1.msra.mxu0 0.0
    %460 = vmatprep.subr.mxu0 0.0
    %461 = vmatpush1.msra.mxu0 0.0
    %462 = vmatprep.subr.mxu0 0.0
    %463 = vmatpush1.msra.mxu0 0.0
    %464 = vmatprep.subr.mxu0 0.0
    %465 = vmatpush1.msra.mxu0 0.0
    %466 = vmatprep.subr.mxu0 0.0
    %467 = vmatpush1.msra.mxu0 0.0
    %468 = vmatprep.subr.mxu0 0.0
    %469 = vmatpush1.msra.mxu0 0.0
    %470 = vmatprep.subr.mxu0 0.0
    %471 = vmatpush1.msra.mxu0 0.0
    %472 = vmatprep.mubr.f32.mxu0 0.0
    %473 = vmatmul.mubr.f32.gmra.mrb[0].mxu0 %v141
    %v474 = vpop.f32.mrb[0].mxu0
    %v475 = vadd.f32 %v406, %v474
    %v476 = vpop.f32.mrb[0].mxu0
    %477 = vdwg.mxu0
    %v478 = vmax.f32 %v475, 0.0
    %v479 = vld [vmem:[%s19] sm:$0xff]
    %v480 = vld [vmem:[%s19 + $0x8] sm:$0xff]
    %v481 = vld [vmem:[%s19 + $0x10] sm:$0xff]
    %v482 = vld [vmem:[%s19 + $0x18] sm:$0xff]
    %v483 = vld [vmem:[%s19 + $0x20] sm:$0xff]
    %v484 = vld [vmem:[%s19 + $0x28] sm:$0xff]
    %v485 = vld [vmem:[%s19 + $0x30] sm:$0xff]
    %v486 = vld [vmem:[%s19 + $0x38] sm:$0xff]
    %v487 = vld [vmem:[%s19 + $0x40] sm:$0xff]
    %v488 = vld [vmem:[%s19 + $0x48] sm:$0xff]
    %v489 = vld [vmem:[%s19 + $0x50] sm:$0xff]
    %v490 = vld [vmem:[%s19 + $0x58] sm:$0xff]
    %v491 = vld [vmem:[%s19 + $0x60] sm:$0xff]
    %v492 = vld [vmem:[%s19 + $0x68] sm:$0xff]
    %v493 = vld [vmem:[%s19 + $0x70] sm:$0xff]
    %v494 = vld [vmem:[%s19 + $0x78] sm:$0xff]
    %v495 = vld [vmem:[%s21] sm:$0x1]
    %v497 = vlaneseq
    %v498 = vshrl.u32 %v497, 7
    %v499 = vsub.s32 0, %v498
    %v500 = vrot.slane %v495, %v499
    %502 = vmatprep.subr.mxu0 0.0
    %503 = vmatpush1.msra.mxu0 %v479
    %504 = vmatprep.subr.mxu0 0.0
    %505 = vmatpush1.msra.mxu0 %v480
    %506 = vmatprep.subr.mxu0 0.0
    %507 = vmatpush1.msra.mxu0 %v481
    %508 = vmatprep.subr.mxu0 0.0
    %509 = vmatpush1.msra.mxu0 %v482
    %510 = vmatprep.subr.mxu0 0.0
    %511 = vmatpush1.msra.mxu0 %v483
    %512 = vmatprep.subr.mxu0 0.0
    %513 = vmatpush1.msra.mxu0 %v484
    %514 = vmatprep.subr.mxu0 0.0
    %515 = vmatpush1.msra.mxu0 %v485
    %516 = vmatprep.subr.mxu0 0.0
    %517 = vmatpush1.msra.mxu0 %v486
    %518 = vmatprep.subr.mxu0 0.0
    %519 = vmatpush1.msra.mxu0 %v487
    %520 = vmatprep.subr.mxu0 0.0
    %521 = vmatpush1.msra.mxu0 %v488
    %522 = vmatprep.subr.mxu0 0.0
    %523 = vmatpush1.msra.mxu0 %v489
    %524 = vmatprep.subr.mxu0 0.0
    %525 = vmatpush1.msra.mxu0 %v490
    %526 = vmatprep.subr.mxu0 0.0
    %527 = vmatpush1.msra.mxu0 %v491
    %528 = vmatprep.subr.mxu0 0.0
    %529 = vmatpush1.msra.mxu0 %v492
    %530 = vmatprep.subr.mxu0 0.0
    %531 = vmatpush1.msra.mxu0 %v493
    %532 = vmatprep.subr.mxu0 0.0
    %533 = vmatpush1.msra.mxu0 %v494
    %534 = vmatprep.subr.mxu0 0.0
    %535 = vmatpush1.msra.mxu0 0.0
    %536 = vmatprep.subr.mxu0 0.0
    %537 = vmatpush1.msra.mxu0 0.0
    %538 = vmatprep.subr.mxu0 0.0
    %539 = vmatpush1.msra.mxu0 0.0
    %540 = vmatprep.subr.mxu0 0.0
    %541 = vmatpush1.msra.mxu0 0.0
    %542 = vmatprep.subr.mxu0 0.0
    %543 = vmatpush1.msra.mxu0 0.0
    %544 = vmatprep.subr.mxu0 0.0
    %545 = vmatpush1.msra.mxu0 0.0
    %546 = vmatprep.subr.mxu0 0.0
    %547 = vmatpush1.msra.mxu0 0.0
    %548 = vmatprep.subr.mxu0 0.0
    %549 = vmatpush1.msra.mxu0 0.0
    %550 = vmatprep.subr.mxu0 0.0
    %551 = vmatpush1.msra.mxu0 0.0
    %552 = vmatprep.subr.mxu0 0.0
    %553 = vmatpush1.msra.mxu0 0.0
    %554 = vmatprep.subr.mxu0 0.0
    %555 = vmatpush1.msra.mxu0 0.0
    %556 = vmatprep.subr.mxu0 0.0
    %557 = vmatpush1.msra.mxu0 0.0
    %558 = vmatprep.subr.mxu0 0.0
    %559 = vmatpush1.msra.mxu0 0.0
    %560 = vmatprep.subr.mxu0 0.0
    %561 = vmatpush1.msra.mxu0 0.0
    %562 = vmatprep.subr.mxu0 0.0
    %563 = vmatpush1.msra.mxu0 0.0
    %564 = vmatprep.subr.mxu0 0.0
    %565 = vmatpush1.msra.mxu0 0.0
    %566 = vmatprep.mubr.f32.mxu0 0.0
    %567 = vmatmul.mubr.f32.gmra.mrb[0].mxu0 %v478
    %v568 = vpop.f32.mrb[0].mxu0
    %v569 = vadd.f32 %v500, %v568
    %v570 = vpop.f32.mrb[0].mxu0
    %571 = vdwg.mxu0
    %v572 = vmax.f32 %v569, 0.0
    %v573 = vld [vmem:[%s23] sm:$0xff]
    %v574 = vld [vmem:[%s23 + $0x8] sm:$0xff]
    %v575 = vld [vmem:[%s23 + $0x10] sm:$0xff]
    %v576 = vld [vmem:[%s23 + $0x18] sm:$0xff]
    %v577 = vld [vmem:[%s23 + $0x20] sm:$0xff]
    %v578 = vld [vmem:[%s23 + $0x28] sm:$0xff]
    %v579 = vld [vmem:[%s23 + $0x30] sm:$0xff]
    %v580 = vld [vmem:[%s23 + $0x38] sm:$0xff]
    %v581 = vld [vmem:[%s25] sm:$0x1]
    %v583 = vlaneseq
    %v584 = vshrl.u32 %v583, 7
    %v585 = vsub.s32 0, %v584
    %v586 = vrot.slane %v581, %v585
    %v589 = vsel %vm323, %v572, 0
    %591 = vmatprep.subr.mxu0 0.0
    %592 = vmatpush1.msra.mxu0 %v573
    %593 = vmatprep.subr.mxu0 0.0
    %594 = vmatpush1.msra.mxu0 %v574
    %595 = vmatprep.subr.mxu0 0.0
    %596 = vmatpush1.msra.mxu0 %v575
    %597 = vmatprep.subr.mxu0 0.0
    %598 = vmatpush1.msra.mxu0 %v576
    %599 = vmatprep.subr.mxu0 0.0
    %600 = vmatpush1.msra.mxu0 %v577
    %601 = vmatprep.subr.mxu0 0.0
    %602 = vmatpush1.msra.mxu0 %v578
    %603 = vmatprep.subr.mxu0 0.0
    %604 = vmatpush1.msra.mxu0 %v579
    %605 = vmatprep.subr.mxu0 0.0
    %606 = vmatpush1.msra.mxu0 %v580
    %607 = vmatprep.subr.mxu0 0.0
    %608 = vmatpush1.msra.mxu0 0.0
    %609 = vmatprep.subr.mxu0 0.0
    %610 = vmatpush1.msra.mxu0 0.0
    %611 = vmatprep.subr.mxu0 0.0
    %612 = vmatpush1.msra.mxu0 0.0
    %613 = vmatprep.subr.mxu0 0.0
    %614 = vmatpush1.msra.mxu0 0.0
    %615 = vmatprep.subr.mxu0 0.0
    %616 = vmatpush1.msra.mxu0 0.0
    %617 = vmatprep.subr.mxu0 0.0
    %618 = vmatpush1.msra.mxu0 0.0
    %619 = vmatprep.subr.mxu0 0.0
    %620 = vmatpush1.msra.mxu0 0.0
    %621 = vmatprep.subr.mxu0 0.0
    %622 = vmatpush1.msra.mxu0 0.0
    %623 = vmatprep.subr.mxu0 0.0
    %624 = vmatpush1.msra.mxu0 0.0
    %625 = vmatprep.subr.mxu0 0.0
    %626 = vmatpush1.msra.mxu0 0.0
    %627 = vmatprep.subr.mxu0 0.0
    %628 = vmatpush1.msra.mxu0 0.0
    %629 = vmatprep.subr.mxu0 0.0
    %630 = vmatpush1.msra.mxu0 0.0
    %631 = vmatprep.subr.mxu0 0.0
    %632 = vmatpush1.msra.mxu0 0.0
    %633 = vmatprep.subr.mxu0 0.0
    %634 = vmatpush1.msra.mxu0 0.0
    %635 = vmatprep.subr.mxu0 0.0
    %636 = vmatpush1.msra.mxu0 0.0
    %637 = vmatprep.subr.mxu0 0.0
    %638 = vmatpush1.msra.mxu0 0.0
    %639 = vmatprep.subr.mxu0 0.0
    %640 = vmatpush1.msra.mxu0 0.0
    %641 = vmatprep.subr.mxu0 0.0
    %642 = vmatpush1.msra.mxu0 0.0
    %643 = vmatprep.subr.mxu0 0.0
    %644 = vmatpush1.msra.mxu0 0.0
    %645 = vmatprep.subr.mxu0 0.0
    %646 = vmatpush1.msra.mxu0 0.0
    %647 = vmatprep.subr.mxu0 0.0
    %648 = vmatpush1.msra.mxu0 0.0
    %649 = vmatprep.subr.mxu0 0.0
    %650 = vmatpush1.msra.mxu0 0.0
    %651 = vmatprep.subr.mxu0 0.0
    %652 = vmatpush1.msra.mxu0 0.0
    %653 = vmatprep.subr.mxu0 0.0
    %654 = vmatpush1.msra.mxu0 0.0
    %655 = vmatprep.mubr.f32.mxu0 0.0
    %656 = vmatmul.mubr.f32.gmra.mrb[0].mxu0 %v589
    %v657 = vpop.f32.mrb[0].mxu0
    %v658 = vadd.f32 %v586, %v657
    %v659 = vpop.f32.mrb[0].mxu0
    %660 = vdwg.mxu0
    %v661 = vmin.f32 %v658, 20.0
    %vm662 = vcmp.gt.f32.partialorder %v658, 20.0
    %v663 = vmul.f32 %v661, 1.442695
    %v664 = vpow.pop %v663
    %v665 = vadd.f32 %v664, 1.0
    %v666 = vlog2.pop %v665
    %v667 = vmul.f32 %v666, 0.6931472
    %v668 = vmul.f32 -0.5, %v664
    %v669 = vadd.f32 %v668, 1.0
    %v670 = vmul.f32 %v669, %v664
    %v671 = vand.u32 2147483647, %v664
    %vm672 = vcmp.lt.f32.partialorder %v671, 0.0004427343
    %v673 = vsel %vm672, %v670, %v667
    %v674 = vsel %vm662, %v658, %v673
    %v675 = vld [vmem:[%s27] sm:$0xff]
    %v676 = vld [vmem:[%s27 + $0x8] sm:$0xff]
    %v677 = vld [vmem:[%s27 + $0x10] sm:$0xff]
    %v678 = vld [vmem:[%s27 + $0x18] sm:$0xff]
    %v679 = vld [vmem:[%s29] sm:$0x1]
    %v681 = vlaneseq
    %v682 = vshrl.u32 %v681, 7
    %v683 = vsub.s32 0, %v682
    %v684 = vrot.slane %v679, %v683
    %686 = vmatprep.subr.mxu0 0.0
    %687 = vmatpush1.msra.mxu0 %v675
    %688 = vmatprep.subr.mxu0 0.0
    %689 = vmatpush1.msra.mxu0 %v676
    %690 = vmatprep.subr.mxu0 0.0
    %691 = vmatpush1.msra.mxu0 %v677
    %692 = vmatprep.subr.mxu0 0.0
    %693 = vmatpush1.msra.mxu0 %v678
    %694 = vmatprep.subr.mxu0 0.0
    %695 = vmatpush1.msra.mxu0 0.0
    %696 = vmatprep.subr.mxu0 0.0
    %697 = vmatpush1.msra.mxu0 0.0
    %698 = vmatprep.subr.mxu0 0.0
    %699 = vmatpush1.msra.mxu0 0.0
    %700 = vmatprep.subr.mxu0 0.0
    %701 = vmatpush1.msra.mxu0 0.0
    %702 = vmatprep.subr.mxu0 0.0
    %703 = vmatpush1.msra.mxu0 0.0
    %704 = vmatprep.subr.mxu0 0.0
    %705 = vmatpush1.msra.mxu0 0.0
    %706 = vmatprep.subr.mxu0 0.0
    %707 = vmatpush1.msra.mxu0 0.0
    %708 = vmatprep.subr.mxu0 0.0
    %709 = vmatpush1.msra.mxu0 0.0
    %710 = vmatprep.subr.mxu0 0.0
    %711 = vmatpush1.msra.mxu0 0.0
    %712 = vmatprep.subr.mxu0 0.0
    %713 = vmatpush1.msra.mxu0 0.0
    %714 = vmatprep.subr.mxu0 0.0
    %715 = vmatpush1.msra.mxu0 0.0
    %716 = vmatprep.subr.mxu0 0.0
    %717 = vmatpush1.msra.mxu0 0.0
    %718 = vmatprep.subr.mxu0 0.0
    %719 = vmatpush1.msra.mxu0 0.0
    %720 = vmatprep.subr.mxu0 0.0
    %721 = vmatpush1.msra.mxu0 0.0
    %722 = vmatprep.subr.mxu0 0.0
    %723 = vmatpush1.msra.mxu0 0.0
    %724 = vmatprep.subr.mxu0 0.0
    %725 = vmatpush1.msra.mxu0 0.0
    %726 = vmatprep.subr.mxu0 0.0
    %727 = vmatpush1.msra.mxu0 0.0
    %728 = vmatprep.subr.mxu0 0.0
    %729 = vmatpush1.msra.mxu0 0.0
    %730 = vmatprep.subr.mxu0 0.0
    %731 = vmatpush1.msra.mxu0 0.0
    %732 = vmatprep.subr.mxu0 0.0
    %733 = vmatpush1.msra.mxu0 0.0
    %734 = vmatprep.subr.mxu0 0.0
    %735 = vmatpush1.msra.mxu0 0.0
    %736 = vmatprep.subr.mxu0 0.0
    %737 = vmatpush1.msra.mxu0 0.0
    %738 = vmatprep.subr.mxu0 0.0
    %739 = vmatpush1.msra.mxu0 0.0
    %740 = vmatprep.subr.mxu0 0.0
    %741 = vmatpush1.msra.mxu0 0.0
    %742 = vmatprep.subr.mxu0 0.0
    %743 = vmatpush1.msra.mxu0 0.0
    %744 = vmatprep.subr.mxu0 0.0
    %745 = vmatpush1.msra.mxu0 0.0
    %746 = vmatprep.subr.mxu0 0.0
    %747 = vmatpush1.msra.mxu0 0.0
    %748 = vmatprep.subr.mxu0 0.0
    %749 = vmatpush1.msra.mxu0 0.0
    %750 = vmatprep.mubr.f32.mxu0 0.0
    %751 = vmatmul.mubr.f32.gmra.mrb[0].mxu0 %v141
    %v752 = vpop.f32.mrb[0].mxu0
    %v753 = vadd.f32 %v684, %v752
    %v754 = vpop.f32.mrb[0].mxu0
    %755 = vdwg.mxu0
    %v756 = vmax.f32 %v753, 0.0
    %v757 = vld [vmem:[%s31] sm:$0xff]
    %v758 = vld [vmem:[%s31 + $0x8] sm:$0xff]
    %v759 = vld [vmem:[%s31 + $0x10] sm:$0xff]
    %v760 = vld [vmem:[%s31 + $0x18] sm:$0xff]
    %v761 = vld [vmem:[%s31 + $0x20] sm:$0xff]
    %v762 = vld [vmem:[%s31 + $0x28] sm:$0xff]
    %v763 = vld [vmem:[%s31 + $0x30] sm:$0xff]
    %v764 = vld [vmem:[%s31 + $0x38] sm:$0xff]
    %v765 = vld [vmem:[%s33] sm:$0x1]
    %v767 = vlaneseq
    %v768 = vshrl.u32 %v767, 7
    %v769 = vsub.s32 0, %v768
    %v770 = vrot.slane %v765, %v769
    %v773 = vsel %vm323, %v756, 0
    %775 = vmatprep.subr.mxu0 0.0
    %776 = vmatpush1.msra.mxu0 %v757
    %777 = vmatprep.subr.mxu0 0.0
    %778 = vmatpush1.msra.mxu0 %v758
    %779 = vmatprep.subr.mxu0 0.0
    %780 = vmatpush1.msra.mxu0 %v759
    %781 = vmatprep.subr.mxu0 0.0
    %782 = vmatpush1.msra.mxu0 %v760
    %783 = vmatprep.subr.mxu0 0.0
    %784 = vmatpush1.msra.mxu0 %v761
    %785 = vmatprep.subr.mxu0 0.0
    %786 = vmatpush1.msra.mxu0 %v762
    %787 = vmatprep.subr.mxu0 0.0
    %788 = vmatpush1.msra.mxu0 %v763
    %789 = vmatprep.subr.mxu0 0.0
    %790 = vmatpush1.msra.mxu0 %v764
    %791 = vmatprep.subr.mxu0 0.0
    %792 = vmatpush1.msra.mxu0 0.0
    %793 = vmatprep.subr.mxu0 0.0
    %794 = vmatpush1.msra.mxu0 0.0
    %795 = vmatprep.subr.mxu0 0.0
    %796 = vmatpush1.msra.mxu0 0.0
    %797 = vmatprep.subr.mxu0 0.0
    %798 = vmatpush1.msra.mxu0 0.0
    %799 = vmatprep.subr.mxu0 0.0
    %800 = vmatpush1.msra.mxu0 0.0
    %801 = vmatprep.subr.mxu0 0.0
    %802 = vmatpush1.msra.mxu0 0.0
    %803 = vmatprep.subr.mxu0 0.0
    %804 = vmatpush1.msra.mxu0 0.0
    %805 = vmatprep.subr.mxu0 0.0
    %806 = vmatpush1.msra.mxu0 0.0
    %807 = vmatprep.subr.mxu0 0.0
    %808 = vmatpush1.msra.mxu0 0.0
    %809 = vmatprep.subr.mxu0 0.0
    %810 = vmatpush1.msra.mxu0 0.0
    %811 = vmatprep.subr.mxu0 0.0
    %812 = vmatpush1.msra.mxu0 0.0
    %813 = vmatprep.subr.mxu0 0.0
    %814 = vmatpush1.msra.mxu0 0.0
    %815 = vmatprep.subr.mxu0 0.0
    %816 = vmatpush1.msra.mxu0 0.0
    %817 = vmatprep.subr.mxu0 0.0
    %818 = vmatpush1.msra.mxu0 0.0
    %819 = vmatprep.subr.mxu0 0.0
    %820 = vmatpush1.msra.mxu0 0.0
    %821 = vmatprep.subr.mxu0 0.0
    %822 = vmatpush1.msra.mxu0 0.0
    %823 = vmatprep.subr.mxu0 0.0
    %824 = vmatpush1.msra.mxu0 0.0
    %825 = vmatprep.subr.mxu0 0.0
    %826 = vmatpush1.msra.mxu0 0.0
    %827 = vmatprep.subr.mxu0 0.0
    %828 = vmatpush1.msra.mxu0 0.0
    %829 = vmatprep.subr.mxu0 0.0
    %830 = vmatpush1.msra.mxu0 0.0
    %831 = vmatprep.subr.mxu0 0.0
    %832 = vmatpush1.msra.mxu0 0.0
    %833 = vmatprep.subr.mxu0 0.0
    %834 = vmatpush1.msra.mxu0 0.0
    %835 = vmatprep.subr.mxu0 0.0
    %836 = vmatpush1.msra.mxu0 0.0
    %837 = vmatprep.subr.mxu0 0.0
    %838 = vmatpush1.msra.mxu0 0.0
    %839 = vmatprep.mubr.f32.mxu0 0.0
    %840 = vmatmul.mubr.f32.gmra.mrb[0].mxu0 %v773
    %v841 = vpop.f32.mrb[0].mxu0
    %v842 = vadd.f32 %v770, %v841
    %v843 = vpop.f32.mrb[0].mxu0
    %844 = vdwg.mxu0
    %v845 = vmax.f32 %v842, 0.0
    %v846 = vld [vmem:[%s35] sm:$0xff]
    %v847 = vld [vmem:[%s35 + $0x8] sm:$0xff]
    %v848 = vld [vmem:[%s35 + $0x10] sm:$0xff]
    %v849 = vld [vmem:[%s35 + $0x18] sm:$0xff]
    %v850 = vld [vmem:[%s37] sm:$0x1]
    %v852 = vlaneseq
    %v853 = vshrl.u32 %v852, 7
    %v854 = vsub.s32 0, %v853
    %v855 = vrot.slane %v850, %v854
    %v858 = vsel %vm139, %v845, 0
    %860 = vmatprep.subr.mxu0 0.0
    %861 = vmatpush1.msra.mxu0 %v846
    %862 = vmatprep.subr.mxu0 0.0
    %863 = vmatpush1.msra.mxu0 %v847
    %864 = vmatprep.subr.mxu0 0.0
    %865 = vmatpush1.msra.mxu0 %v848
    %866 = vmatprep.subr.mxu0 0.0
    %867 = vmatpush1.msra.mxu0 %v849
    %868 = vmatprep.subr.mxu0 0.0
    %869 = vmatpush1.msra.mxu0 0.0
    %870 = vmatprep.subr.mxu0 0.0
    %871 = vmatpush1.msra.mxu0 0.0
    %872 = vmatprep.subr.mxu0 0.0
    %873 = vmatpush1.msra.mxu0 0.0
    %874 = vmatprep.subr.mxu0 0.0
    %875 = vmatpush1.msra.mxu0 0.0
    %876 = vmatprep.subr.mxu0 0.0
    %877 = vmatpush1.msra.mxu0 0.0
    %878 = vmatprep.subr.mxu0 0.0
    %879 = vmatpush1.msra.mxu0 0.0
    %880 = vmatprep.subr.mxu0 0.0
    %881 = vmatpush1.msra.mxu0 0.0
    %882 = vmatprep.subr.mxu0 0.0
    %883 = vmatpush1.msra.mxu0 0.0
    %884 = vmatprep.subr.mxu0 0.0
    %885 = vmatpush1.msra.mxu0 0.0
    %886 = vmatprep.subr.mxu0 0.0
    %887 = vmatpush1.msra.mxu0 0.0
    %888 = vmatprep.subr.mxu0 0.0
    %889 = vmatpush1.msra.mxu0 0.0
    %890 = vmatprep.subr.mxu0 0.0
    %891 = vmatpush1.msra.mxu0 0.0
    %892 = vmatprep.subr.mxu0 0.0
    %893 = vmatpush1.msra.mxu0 0.0
    %894 = vmatprep.subr.mxu0 0.0
    %895 = vmatpush1.msra.mxu0 0.0
    %896 = vmatprep.subr.mxu0 0.0
    %897 = vmatpush1.msra.mxu0 0.0
    %898 = vmatprep.subr.mxu0 0.0
    %899 = vmatpush1.msra.mxu0 0.0
    %900 = vmatprep.subr.mxu0 0.0
    %901 = vmatpush1.msra.mxu0 0.0
    %902 = vmatprep.subr.mxu0 0.0
    %903 = vmatpush1.msra.mxu0 0.0
    %904 = vmatprep.subr.mxu0 0.0
    %905 = vmatpush1.msra.mxu0 0.0
    %906 = vmatprep.subr.mxu0 0.0
    %907 = vmatpush1.msra.mxu0 0.0
    %908 = vmatprep.subr.mxu0 0.0
    %909 = vmatpush1.msra.mxu0 0.0
    %910 = vmatprep.subr.mxu0 0.0
    %911 = vmatpush1.msra.mxu0 0.0
    %912 = vmatprep.subr.mxu0 0.0
    %913 = vmatpush1.msra.mxu0 0.0
    %914 = vmatprep.subr.mxu0 0.0
    %915 = vmatpush1.msra.mxu0 0.0
    %916 = vmatprep.subr.mxu0 0.0
    %917 = vmatpush1.msra.mxu0 0.0
    %918 = vmatprep.subr.mxu0 0.0
    %919 = vmatpush1.msra.mxu0 0.0
    %920 = vmatprep.subr.mxu0 0.0
    %921 = vmatpush1.msra.mxu0 0.0
    %922 = vmatprep.subr.mxu0 0.0
    %923 = vmatpush1.msra.mxu0 0.0
    %924 = vmatprep.mubr.f32.mxu0 0.0
    %925 = vmatmul.mubr.f32.gmra.mrb[0].mxu0 %v858
    %v926 = vpop.f32.mrb[0].mxu0
    %v927 = vadd.f32 %v855, %v926
    %v928 = vpop.f32.mrb[0].mxu0
    %929 = vdwg.mxu0
    %v930 = vmin.f32 %v927, 20.0
    %vm931 = vcmp.gt.f32.partialorder %v927, 20.0
    %v932 = vmul.f32 %v930, 1.442695
    %v933 = vpow.pop %v932
    %v934 = vadd.f32 %v933, 1.0
    %v935 = vlog2.pop %v934
    %v936 = vmul.f32 %v935, 0.6931472
    %v937 = vmul.f32 -0.5, %v933
    %v938 = vadd.f32 %v937, 1.0
    %v939 = vmul.f32 %v938, %v933
    %v940 = vand.u32 2147483647, %v933
    %vm941 = vcmp.lt.f32.partialorder %v940, 0.0004427343
    %v942 = vsel %vm941, %v939, %v936
    %v943 = vsel %vm931, %v927, %v942
    %v944 = vld [vmem:[%s39] sm:$0xff]
    %v945 = vld [vmem:[%s39 + $0x8] sm:$0xff]
    %v946 = vld [vmem:[%s39 + $0x10] sm:$0xff]
    %v947 = vld [vmem:[%s39 + $0x18] sm:$0xff]
    %v948 = vld [vmem:[%s41] sm:$0x1]
    %v950 = vlaneseq
    %v951 = vshrl.u32 %v950, 7
    %v952 = vsub.s32 0, %v951
    %v953 = vrot.slane %v948, %v952
    %955 = vmatprep.subr.mxu0 0.0
    %956 = vmatpush1.msra.mxu0 %v944
    %957 = vmatprep.subr.mxu0 0.0
    %958 = vmatpush1.msra.mxu0 %v945
    %959 = vmatprep.subr.mxu0 0.0
    %960 = vmatpush1.msra.mxu0 %v946
    %961 = vmatprep.subr.mxu0 0.0
    %962 = vmatpush1.msra.mxu0 %v947
    %963 = vmatprep.subr.mxu0 0.0
    %964 = vmatpush1.msra.mxu0 0.0
    %965 = vmatprep.subr.mxu0 0.0
    %966 = vmatpush1.msra.mxu0 0.0
    %967 = vmatprep.subr.mxu0 0.0
    %968 = vmatpush1.msra.mxu0 0.0
    %969 = vmatprep.subr.mxu0 0.0
    %970 = vmatpush1.msra.mxu0 0.0
    %971 = vmatprep.subr.mxu0 0.0
    %972 = vmatpush1.msra.mxu0 0.0
    %973 = vmatprep.subr.mxu0 0.0
    %974 = vmatpush1.msra.mxu0 0.0
    %975 = vmatprep.subr.mxu0 0.0
    %976 = vmatpush1.msra.mxu0 0.0
    %977 = vmatprep.subr.mxu0 0.0
    %978 = vmatpush1.msra.mxu0 0.0
    %979 = vmatprep.subr.mxu0 0.0
    %980 = vmatpush1.msra.mxu0 0.0
    %981 = vmatprep.subr.mxu0 0.0
    %982 = vmatpush1.msra.mxu0 0.0
    %983 = vmatprep.subr.mxu0 0.0
    %984 = vmatpush1.msra.mxu0 0.0
    %985 = vmatprep.subr.mxu0 0.0
    %986 = vmatpush1.msra.mxu0 0.0
    %987 = vmatprep.subr.mxu0 0.0
    %988 = vmatpush1.msra.mxu0 0.0
    %989 = vmatprep.subr.mxu0 0.0
    %990 = vmatpush1.msra.mxu0 0.0
    %991 = vmatprep.subr.mxu0 0.0
    %992 = vmatpush1.msra.mxu0 0.0
    %993 = vmatprep.subr.mxu0 0.0
    %994 = vmatpush1.msra.mxu0 0.0
    %995 = vmatprep.subr.mxu0 0.0
    %996 = vmatpush1.msra.mxu0 0.0
    %997 = vmatprep.subr.mxu0 0.0
    %998 = vmatpush1.msra.mxu0 0.0
    %999 = vmatprep.subr.mxu0 0.0
    %1000 = vmatpush1.msra.mxu0 0.0
    %1001 = vmatprep.subr.mxu0 0.0
    %1002 = vmatpush1.msra.mxu0 0.0
    %1003 = vmatprep.subr.mxu0 0.0
    %1004 = vmatpush1.msra.mxu0 0.0
    %1005 = vmatprep.subr.mxu0 0.0
    %1006 = vmatpush1.msra.mxu0 0.0
    %1007 = vmatprep.subr.mxu0 0.0
    %1008 = vmatpush1.msra.mxu0 0.0
    %1009 = vmatprep.subr.mxu0 0.0
    %1010 = vmatpush1.msra.mxu0 0.0
    %1011 = vmatprep.subr.mxu0 0.0
    %1012 = vmatpush1.msra.mxu0 0.0
    %1013 = vmatprep.subr.mxu0 0.0
    %1014 = vmatpush1.msra.mxu0 0.0
    %1015 = vmatprep.subr.mxu0 0.0
    %1016 = vmatpush1.msra.mxu0 0.0
    %1017 = vmatprep.subr.mxu0 0.0
    %1018 = vmatpush1.msra.mxu0 0.0
    %1019 = vmatprep.mubr.f32.mxu0 0.0
    %1020 = vmatmul.mubr.f32.gmra.mrb[0].mxu0 %v141
    %v1021 = vpop.f32.mrb[0].mxu0
    %v1022 = vadd.f32 %v953, %v1021
    %v1023 = vpop.f32.mrb[0].mxu0
    %1024 = vdwg.mxu0
    %v1025 = vrot.slane %v1022, 4
    %v1026 = vadd.f32 %v1022, %v1025
    %v1027 = vrot.slane %v1026, 2
    %v1028 = vadd.f32 %v1026, %v1027
    %v1029 = vrot.slane %v1028, 1
    %v1030 = vadd.f32 %v1028, %v1029
    %v1031 = vrcp.pop 8.0
    %v1032 = vmul.f32 %v1030, %v1031
    %v1033 = vsub.f32 %v1022, %v1032
    %v1034 = vmul.f32 %v1033, %v1033
    %v1035 = vrot.slane %v1034, 4
    %v1036 = vadd.f32 %v1034, %v1035
    %v1037 = vrot.slane %v1036, 2
    %v1038 = vadd.f32 %v1036, %v1037
    %v1039 = vrot.slane %v1038, 1
    %v1040 = vadd.f32 %v1038, %v1039
    %v1041 = vmul.f32 %v1040, %v1031
    %v1042 = vadd.f32 %v1041, 1e-05
    %v1043 = vrsqrt.pop %v1042
    %v1044 = vmul.f32 %v1033, %v1043
    %v1045 = vld [vmem:[%s43] sm:$0x1]
    %v1047 = vlaneseq
    %v1048 = vshrl.u32 %v1047, 7
    %v1049 = vsub.s32 0, %v1048
    %v1050 = vrot.slane %v1045, %v1049
    %v1052 = vmul.f32 %v1044, %v1050
    %v1053 = vld [vmem:[%s45] sm:$0x1]
    %v1055 = vlaneseq
    %v1056 = vshrl.u32 %v1055, 7
    %v1057 = vsub.s32 0, %v1056
    %v1058 = vrot.slane %v1053, %v1057
    %v1060 = vadd.f32 %v1052, %v1058
    %v1061 = vmax.f32 %v1060, 0.0
    %v1062 = vld [vmem:[%s55] sm:$0xff]
    %v1063 = vld [vmem:[%s55 + $0x8] sm:$0xff]
    %v1064 = vld [vmem:[%s55 + $0x10] sm:$0xff]
    %v1065 = vld [vmem:[%s55 + $0x18] sm:$0xff]
    %v1066 = vld [vmem:[%s55 + $0x20] sm:$0xff]
    %v1067 = vld [vmem:[%s55 + $0x28] sm:$0xff]
    %v1068 = vld [vmem:[%s55 + $0x30] sm:$0xff]
    %v1069 = vld [vmem:[%s55 + $0x38] sm:$0xff]
    %v1070 = vld [vmem:[%s55 + $0x40] sm:$0xff]
    %v1071 = vld [vmem:[%s55 + $0x48] sm:$0xff]
    %v1072 = vld [vmem:[%s55 + $0x50] sm:$0xff]
    %v1073 = vld [vmem:[%s55 + $0x58] sm:$0xff]
    %v1074 = vld [vmem:[%s55 + $0x60] sm:$0xff]
    %v1075 = vld [vmem:[%s55 + $0x68] sm:$0xff]
    %v1076 = vld [vmem:[%s55 + $0x70] sm:$0xff]
    %v1077 = vld [vmem:[%s55 + $0x78] sm:$0xff]
    %v1078 = vmul.f32 %v1061, %v1062
    %v1079 = vmul.f32 %v1061, %v1063
    %v1080 = vmul.f32 %v1061, %v1064
    %v1081 = vmul.f32 %v1061, %v1065
    %v1082 = vmul.f32 %v1061, %v1066
    %v1083 = vmul.f32 %v1061, %v1067
    %v1084 = vmul.f32 %v1061, %v1068
    %v1085 = vmul.f32 %v1061, %v1069
    %v1086 = vmul.f32 %v1061, %v1070
    %v1087 = vmul.f32 %v1061, %v1071
    %v1088 = vmul.f32 %v1061, %v1072
    %v1089 = vmul.f32 %v1061, %v1073
    %v1090 = vmul.f32 %v1061, %v1074
    %v1091 = vmul.f32 %v1061, %v1075
    %v1092 = vmul.f32 %v1061, %v1076
    %v1093 = vmul.f32 %v1061, %v1077
    %v1094 = vld [vmem:[%s47] sm:$0xff]
    %v1095 = vld [vmem:[%s47 + $0x8] sm:$0xff]
    %v1096 = vld [vmem:[%s47 + $0x10] sm:$0xff]
    %v1097 = vld [vmem:[%s47 + $0x18] sm:$0xff]
    %v1098 = vld [vmem:[%s47 + $0x20] sm:$0xff]
    %v1099 = vld [vmem:[%s47 + $0x28] sm:$0xff]
    %v1100 = vld [vmem:[%s47 + $0x30] sm:$0xff]
    %v1101 = vld [vmem:[%s47 + $0x38] sm:$0xff]
    %v1102 = vld [vmem:[%s47 + $0x40] sm:$0xff]
    %v1103 = vld [vmem:[%s47 + $0x48] sm:$0xff]
    %v1104 = vld [vmem:[%s47 + $0x50] sm:$0xff]
    %v1105 = vld [vmem:[%s47 + $0x58] sm:$0xff]
    %v1106 = vld [vmem:[%s47 + $0x60] sm:$0xff]
    %v1107 = vld [vmem:[%s47 + $0x68] sm:$0xff]
    %v1108 = vld [vmem:[%s47 + $0x70] sm:$0xff]
    %v1109 = vld [vmem:[%s47 + $0x78] sm:$0xff]
    %v1110 = vld [vmem:[%s49] sm:$0x1]
    %v1112 = vlaneseq
    %v1113 = vshrl.u32 %v1112, 7
    %v1114 = vsub.s32 0, %v1113
    %v1115 = vrot.slane %v1110, %v1114
    %1117 = vmatprep.subr.mxu0 0.0
    %1118 = vmatpush1.msra.mxu0 %v1094
    %1119 = vmatprep.subr.mxu0 0.0
    %1120 = vmatpush1.msra.mxu0 %v1095
    %1121 = vmatprep.subr.mxu0 0.0
    %1122 = vmatpush1.msra.mxu0 %v1096
    %1123 = vmatprep.subr.mxu0 0.0
    %1124 = vmatpush1.msra.mxu0 %v1097
    %1125 = vmatprep.subr.mxu0 0.0
    %1126 = vmatpush1.msra.mxu0 %v1098
    %1127 = vmatprep.subr.mxu0 0.0
    %1128 = vmatpush1.msra.mxu0 %v1099
    %1129 = vmatprep.subr.mxu0 0.0
    %1130 = vmatpush1.msra.mxu0 %v1100
    %1131 = vmatprep.subr.mxu0 0.0
    %1132 = vmatpush1.msra.mxu0 %v1101
    %1133 = vmatprep.subr.mxu0 0.0
    %1134 = vmatpush1.msra.mxu0 %v1102
    %1135 = vmatprep.subr.mxu0 0.0
    %1136 = vmatpush1.msra.mxu0 %v1103
    %1137 = vmatprep.subr.mxu0 0.0
    %1138 = vmatpush1.msra.mxu0 %v1104
    %1139 = vmatprep.subr.mxu0 0.0
    %1140 = vmatpush1.msra.mxu0 %v1105
    %1141 = vmatprep.subr.mxu0 0.0
    %1142 = vmatpush1.msra.mxu0 %v1106
    %1143 = vmatprep.subr.mxu0 0.0
    %1144 = vmatpush1.msra.mxu0 %v1107
    %1145 = vmatprep.subr.mxu0 0.0
    %1146 = vmatpush1.msra.mxu0 %v1108
    %1147 = vmatprep.subr.mxu0 0.0
    %1148 = vmatpush1.msra.mxu0 %v1109
    %1149 = vmatprep.subr.mxu0 0.0
    %1150 = vmatpush1.msra.mxu0 0.0
    %1151 = vmatprep.subr.mxu0 0.0
    %1152 = vmatpush1.msra.mxu0 0.0
    %1153 = vmatprep.subr.mxu0 0.0
    %1154 = vmatpush1.msra.mxu0 0.0
    %1155 = vmatprep.subr.mxu0 0.0
    %1156 = vmatpush1.msra.mxu0 0.0
    %1157 = vmatprep.subr.mxu0 0.0
    %1158 = vmatpush1.msra.mxu0 0.0
    %1159 = vmatprep.subr.mxu0 0.0
    %1160 = vmatpush1.msra.mxu0 0.0
    %1161 = vmatprep.subr.mxu0 0.0
    %1162 = vmatpush1.msra.mxu0 0.0
    %1163 = vmatprep.subr.mxu0 0.0
    %1164 = vmatpush1.msra.mxu0 0.0
    %1165 = vmatprep.subr.mxu0 0.0
    %1166 = vmatpush1.msra.mxu0 0.0
    %1167 = vmatprep.subr.mxu0 0.0
    %1168 = vmatpush1.msra.mxu0 0.0
    %1169 = vmatprep.subr.mxu0 0.0
    %1170 = vmatpush1.msra.mxu0 0.0
    %1171 = vmatprep.subr.mxu0 0.0
    %1172 = vmatpush1.msra.mxu0 0.0
    %1173 = vmatprep.subr.mxu0 0.0
    %1174 = vmatpush1.msra.mxu0 0.0
    %1175 = vmatprep.subr.mxu0 0.0
    %1176 = vmatpush1.msra.mxu0 0.0
    %1177 = vmatprep.subr.mxu0 0.0
    %1178 = vmatpush1.msra.mxu0 0.0
    %1179 = vmatprep.subr.mxu0 0.0
    %1180 = vmatpush1.msra.mxu0 0.0
    %1181 = vmatprep.mubr.f32.mxu0 0.0
    %1182 = vmatmul.mubr.f32.gmra.mrb[0].mxu0 %v1078
    %v1183 = vpop.f32.mrb[0].mxu0
    %v1184 = vadd.f32 %v1115, %v1183
    %v1185 = vpop.f32.mrb[0].mxu0
    %1186 = vmatprep.mubr.f32.mxu0 0.0
    %1187 = vmatmul.mubr.f32.gmra.mrb[0].mxu0 %v1079
    %v1188 = vpop.f32.mrb[0].mxu0
    %v1189 = vadd.f32 %v1115, %v1188
    %v1190 = vpop.f32.mrb[0].mxu0
    %1191 = vmatprep.mubr.f32.mxu0 0.0
    %1192 = vmatmul.mubr.f32.gmra.mrb[0].mxu0 %v1080
    %v1193 = vpop.f32.mrb[0].mxu0
    %v1194 = vadd.f32 %v1115, %v1193
    %v1195 = vpop.f32.mrb[0].mxu0
    %1196 = vmatprep.mubr.f32.mxu0 0.0
    %1197 = vmatmul.mubr.f32.gmra.mrb[0].mxu0 %v1081
    %v1198 = vpop.f32.mrb[0].mxu0
    %v1199 = vadd.f32 %v1115, %v1198
    %v1200 = vpop.f32.mrb[0].mxu0
    %1201 = vmatprep.mubr.f32.mxu0 0.0
    %1202 = vmatmul.mubr.f32.gmra.mrb[0].mxu0 %v1082
    %v1203 = vpop.f32.mrb[0].mxu0
    %v1204 = vadd.f32 %v1115, %v1203
    %v1205 = vpop.f32.mrb[0].mxu0
    %1206 = vmatprep.mubr.f32.mxu0 0.0
    %1207 = vmatmul.mubr.f32.gmra.mrb[0].mxu0 %v1083
    %v1208 = vpop.f32.mrb[0].mxu0
    %v1209 = vadd.f32 %v1115, %v1208
    %v1210 = vpop.f32.mrb[0].mxu0
    %1211 = vmatprep.mubr.f32.mxu0 0.0
    %1212 = vmatmul.mubr.f32.gmra.mrb[0].mxu0 %v1084
    %v1213 = vpop.f32.mrb[0].mxu0
    %v1214 = vadd.f32 %v1115, %v1213
    %v1215 = vpop.f32.mrb[0].mxu0
    %1216 = vmatprep.mubr.f32.mxu0 0.0
    %1217 = vmatmul.mubr.f32.gmra.mrb[0].mxu0 %v1085
    %v1218 = vpop.f32.mrb[0].mxu0
    %v1219 = vadd.f32 %v1115, %v1218
    %v1220 = vpop.f32.mrb[0].mxu0
    %1221 = vmatprep.mubr.f32.mxu0 0.0
    %1222 = vmatmul.mubr.f32.gmra.mrb[0].mxu0 %v1086
    %v1223 = vpop.f32.mrb[0].mxu0
    %v1224 = vadd.f32 %v1115, %v1223
    %v1225 = vpop.f32.mrb[0].mxu0
    %1226 = vmatprep.mubr.f32.mxu0 0.0
    %1227 = vmatmul.mubr.f32.gmra.mrb[0].mxu0 %v1087
    %v1228 = vpop.f32.mrb[0].mxu0
    %v1229 = vadd.f32 %v1115, %v1228
    %v1230 = vpop.f32.mrb[0].mxu0
    %1231 = vmatprep.mubr.f32.mxu0 0.0
    %1232 = vmatmul.mubr.f32.gmra.mrb[0].mxu0 %v1088
    %v1233 = vpop.f32.mrb[0].mxu0
    %v1234 = vadd.f32 %v1115, %v1233
    %v1235 = vpop.f32.mrb[0].mxu0
    %1236 = vmatprep.mubr.f32.mxu0 0.0
    %1237 = vmatmul.mubr.f32.gmra.mrb[0].mxu0 %v1089
    %v1238 = vpop.f32.mrb[0].mxu0
    %v1239 = vadd.f32 %v1115, %v1238
    %v1240 = vpop.f32.mrb[0].mxu0
    %1241 = vmatprep.mubr.f32.mxu0 0.0
    %1242 = vmatmul.mubr.f32.gmra.mrb[0].mxu0 %v1090
    %v1243 = vpop.f32.mrb[0].mxu0
    %v1244 = vadd.f32 %v1115, %v1243
    %v1245 = vpop.f32.mrb[0].mxu0
    %1246 = vmatprep.mubr.f32.mxu0 0.0
    %1247 = vmatmul.mubr.f32.gmra.mrb[0].mxu0 %v1091
    %v1248 = vpop.f32.mrb[0].mxu0
    %v1249 = vadd.f32 %v1115, %v1248
    %v1250 = vpop.f32.mrb[0].mxu0
    %1251 = vmatprep.mubr.f32.mxu0 0.0
    %1252 = vmatmul.mubr.f32.gmra.mrb[0].mxu0 %v1092
    %v1253 = vpop.f32.mrb[0].mxu0
    %v1254 = vadd.f32 %v1115, %v1253
    %v1255 = vpop.f32.mrb[0].mxu0
    %1256 = vmatprep.mubr.f32.mxu0 0.0
    %1257 = vmatmul.mubr.f32.gmra.mrb[0].mxu0 %v1093
    %v1258 = vpop.f32.mrb[0].mxu0
    %v1259 = vadd.f32 %v1115, %v1258
    %v1260 = vpop.f32.mrb[0].mxu0
    %1261 = vdwg.mxu0
    %v1262 = vsel %vm323, %v1184, 0.0
    %v1263 = vrot.slane %v1262, 4
    %v1264 = vadd.f32 %v1262, %v1263
    %v1265 = vrot.slane %v1264, 2
    %v1266 = vadd.f32 %v1264, %v1265
    %v1267 = vrot.slane %v1266, 1
    %v1268 = vadd.f32 %v1266, %v1267
    %v1269 = vsel %vm323, %v1189, 0.0
    %v1270 = vrot.slane %v1269, 4
    %v1271 = vadd.f32 %v1269, %v1270
    %v1272 = vrot.slane %v1271, 2
    %v1273 = vadd.f32 %v1271, %v1272
    %v1274 = vrot.slane %v1273, 1
    %v1275 = vadd.f32 %v1273, %v1274
    %v1276 = vsel %vm323, %v1194, 0.0
    %v1277 = vrot.slane %v1276, 4
    %v1278 = vadd.f32 %v1276, %v1277
    %v1279 = vrot.slane %v1278, 2
    %v1280 = vadd.f32 %v1278, %v1279
    %v1281 = vrot.slane %v1280, 1
    %v1282 = vadd.f32 %v1280, %v1281
    %v1283 = vsel %vm323, %v1199, 0.0
    %v1284 = vrot.slane %v1283, 4
    %v1285 = vadd.f32 %v1283, %v1284
    %v1286 = vrot.slane %v1285, 2
    %v1287 = vadd.f32 %v1285, %v1286
    %v1288 = vrot.slane %v1287, 1
    %v1289 = vadd.f32 %v1287, %v1288
    %v1290 = vsel %vm323, %v1204, 0.0
    %v1291 = vrot.slane %v1290, 4
    %v1292 = vadd.f32 %v1290, %v1291
    %v1293 = vrot.slane %v1292, 2
    %v1294 = vadd.f32 %v1292, %v1293
    %v1295 = vrot.slane %v1294, 1
    %v1296 = vadd.f32 %v1294, %v1295
    %v1297 = vsel %vm323, %v1209, 0.0
    %v1298 = vrot.slane %v1297, 4
    %v1299 = vadd.f32 %v1297, %v1298
    %v1300 = vrot.slane %v1299, 2
    %v1301 = vadd.f32 %v1299, %v1300
    %v1302 = vrot.slane %v1301, 1
    %v1303 = vadd.f32 %v1301, %v1302
    %v1304 = vsel %vm323, %v1214, 0.0
    %v1305 = vrot.slane %v1304, 4
    %v1306 = vadd.f32 %v1304, %v1305
    %v1307 = vrot.slane %v1306, 2
    %v1308 = vadd.f32 %v1306, %v1307
    %v1309 = vrot.slane %v1308, 1
    %v1310 = vadd.f32 %v1308, %v1309
    %v1311 = vsel %vm323, %v1219, 0.0
    %v1312 = vrot.slane %v1311, 4
    %v1313 = vadd.f32 %v1311, %v1312
    %v1314 = vrot.slane %v1313, 2
    %v1315 = vadd.f32 %v1313, %v1314
    %v1316 = vrot.slane %v1315, 1
    %v1317 = vadd.f32 %v1315, %v1316
    %v1318 = vsel %vm323, %v1224, 0.0
    %v1319 = vrot.slane %v1318, 4
    %v1320 = vadd.f32 %v1318, %v1319
    %v1321 = vrot.slane %v1320, 2
    %v1322 = vadd.f32 %v1320, %v1321
    %v1323 = vrot.slane %v1322, 1
    %v1324 = vadd.f32 %v1322, %v1323
    %v1325 = vsel %vm323, %v1229, 0.0
    %v1326 = vrot.slane %v1325, 4
    %v1327 = vadd.f32 %v1325, %v1326
    %v1328 = vrot.slane %v1327, 2
    %v1329 = vadd.f32 %v1327, %v1328
    %v1330 = vrot.slane %v1329, 1
    %v1331 = vadd.f32 %v1329, %v1330
    %v1332 = vsel %vm323, %v1234, 0.0
    %v1333 = vrot.slane %v1332, 4
    %v1334 = vadd.f32 %v1332, %v1333
    %v1335 = vrot.slane %v1334, 2
    %v1336 = vadd.f32 %v1334, %v1335
    %v1337 = vrot.slane %v1336, 1
    %v1338 = vadd.f32 %v1336, %v1337
    %v1339 = vsel %vm323, %v1239, 0.0
    %v1340 = vrot.slane %v1339, 4
    %v1341 = vadd.f32 %v1339, %v1340
    %v1342 = vrot.slane %v1341, 2
    %v1343 = vadd.f32 %v1341, %v1342
    %v1344 = vrot.slane %v1343, 1
    %v1345 = vadd.f32 %v1343, %v1344
    %v1346 = vsel %vm323, %v1244, 0.0
    %v1347 = vrot.slane %v1346, 4
    %v1348 = vadd.f32 %v1346, %v1347
    %v1349 = vrot.slane %v1348, 2
    %v1350 = vadd.f32 %v1348, %v1349
    %v1351 = vrot.slane %v1350, 1
    %v1352 = vadd.f32 %v1350, %v1351
    %v1353 = vsel %vm323, %v1249, 0.0
    %v1354 = vrot.slane %v1353, 4
    %v1355 = vadd.f32 %v1353, %v1354
    %v1356 = vrot.slane %v1355, 2
    %v1357 = vadd.f32 %v1355, %v1356
    %v1358 = vrot.slane %v1357, 1
    %v1359 = vadd.f32 %v1357, %v1358
    %v1360 = vsel %vm323, %v1254, 0.0
    %v1361 = vrot.slane %v1360, 4
    %v1362 = vadd.f32 %v1360, %v1361
    %v1363 = vrot.slane %v1362, 2
    %v1364 = vadd.f32 %v1362, %v1363
    %v1365 = vrot.slane %v1364, 1
    %v1366 = vadd.f32 %v1364, %v1365
    %v1367 = vsel %vm323, %v1259, 0.0
    %v1368 = vrot.slane %v1367, 4
    %v1369 = vadd.f32 %v1367, %v1368
    %v1370 = vrot.slane %v1369, 2
    %v1371 = vadd.f32 %v1369, %v1370
    %v1372 = vrot.slane %v1371, 1
    %v1373 = vadd.f32 %v1371, %v1372
    %v1374 = vmul.f32 %v1268, %v1031
    %v1375 = vmul.f32 %v1275, %v1031
    %v1376 = vmul.f32 %v1282, %v1031
    %v1377 = vmul.f32 %v1289, %v1031
    %v1378 = vmul.f32 %v1296, %v1031
    %v1379 = vmul.f32 %v1303, %v1031
    %v1380 = vmul.f32 %v1310, %v1031
    %v1381 = vmul.f32 %v1317, %v1031
    %v1382 = vmul.f32 %v1324, %v1031
    %v1383 = vmul.f32 %v1331, %v1031
    %v1384 = vmul.f32 %v1338, %v1031
    %v1385 = vmul.f32 %v1345, %v1031
    %v1386 = vmul.f32 %v1352, %v1031
    %v1387 = vmul.f32 %v1359, %v1031
    %v1388 = vmul.f32 %v1366, %v1031
    %v1389 = vmul.f32 %v1373, %v1031
    %v1390 = vsub.f32 %v1184, %v1374
    %v1391 = vsub.f32 %v1189, %v1375
    %v1392 = vsub.f32 %v1194, %v1376
    %v1393 = vsub.f32 %v1199, %v1377
    %v1394 = vsub.f32 %v1204, %v1378
    %v1395 = vsub.f32 %v1209, %v1379
    %v1396 = vsub.f32 %v1214, %v1380
    %v1397 = vsub.f32 %v1219, %v1381
    %v1398 = vsub.f32 %v1224, %v1382
    %v1399 = vsub.f32 %v1229, %v1383
    %v1400 = vsub.f32 %v1234, %v1384
    %v1401 = vsub.f32 %v1239, %v1385
    %v1402 = vsub.f32 %v1244, %v1386
    %v1403 = vsub.f32 %v1249, %v1387
    %v1404 = vsub.f32 %v1254, %v1388
    %v1405 = vsub.f32 %v1259, %v1389
    %v1406 = vmul.f32 %v1390, %v1390
    %v1407 = vmul.f32 %v1391, %v1391
    %v1408 = vmul.f32 %v1392, %v1392
    %v1409 = vmul.f32 %v1393, %v1393
    %v1410 = vmul.f32 %v1394, %v1394
    %v1411 = vmul.f32 %v1395, %v1395
    %v1412 = vmul.f32 %v1396, %v1396
    %v1413 = vmul.f32 %v1397, %v1397
    %v1414 = vmul.f32 %v1398, %v1398
    %v1415 = vmul.f32 %v1399, %v1399
    %v1416 = vmul.f32 %v1400, %v1400
    %v1417 = vmul.f32 %v1401, %v1401
    %v1418 = vmul.f32 %v1402, %v1402
    %v1419 = vmul.f32 %v1403, %v1403
    %v1420 = vmul.f32 %v1404, %v1404
    %v1421 = vmul.f32 %v1405, %v1405
    %v1422 = vsel %vm323, %v1406, 0.0
    %v1423 = vrot.slane %v1422, 4
    %v1424 = vadd.f32 %v1422, %v1423
    %v1425 = vrot.slane %v1424, 2
    %v1426 = vadd.f32 %v1424, %v1425
    %v1427 = vrot.slane %v1426, 1
    %v1428 = vadd.f32 %v1426, %v1427
    %v1429 = vsel %vm323, %v1407, 0.0
    %v1430 = vrot.slane %v1429, 4
    %v1431 = vadd.f32 %v1429, %v1430
    %v1432 = vrot.slane %v1431, 2
    %v1433 = vadd.f32 %v1431, %v1432
    %v1434 = vrot.slane %v1433, 1
    %v1435 = vadd.f32 %v1433, %v1434
    %v1436 = vsel %vm323, %v1408, 0.0
    %v1437 = vrot.slane %v1436, 4
    %v1438 = vadd.f32 %v1436, %v1437
    %v1439 = vrot.slane %v1438, 2
    %v1440 = vadd.f32 %v1438, %v1439
    %v1441 = vrot.slane %v1440, 1
    %v1442 = vadd.f32 %v1440, %v1441
    %v1443 = vsel %vm323, %v1409, 0.0
    %v1444 = vrot.slane %v1443, 4
    %v1445 = vadd.f32 %v1443, %v1444
    %v1446 = vrot.slane %v1445, 2
    %v1447 = vadd.f32 %v1445, %v1446
    %v1448 = vrot.slane %v1447, 1
    %v1449 = vadd.f32 %v1447, %v1448
    %v1450 = vsel %vm323, %v1410, 0.0
    %v1451 = vrot.slane %v1450, 4
    %v1452 = vadd.f32 %v1450, %v1451
    %v1453 = vrot.slane %v1452, 2
    %v1454 = vadd.f32 %v1452, %v1453
    %v1455 = vrot.slane %v1454, 1
    %v1456 = vadd.f32 %v1454, %v1455
    %v1457 = vsel %vm323, %v1411, 0.0
    %v1458 = vrot.slane %v1457, 4
    %v1459 = vadd.f32 %v1457, %v1458
    %v1460 = vrot.slane %v1459, 2
    %v1461 = vadd.f32 %v1459, %v1460
    %v1462 = vrot.slane %v1461, 1
    %v1463 = vadd.f32 %v1461, %v1462
    %v1464 = vsel %vm323, %v1412, 0.0
    %v1465 = vrot.slane %v1464, 4
    %v1466 = vadd.f32 %v1464, %v1465
    %v1467 = vrot.slane %v1466, 2
    %v1468 = vadd.f32 %v1466, %v1467
    %v1469 = vrot.slane %v1468, 1
    %v1470 = vadd.f32 %v1468, %v1469
    %v1471 = vsel %vm323, %v1413, 0.0
    %v1472 = vrot.slane %v1471, 4
    %v1473 = vadd.f32 %v1471, %v1472
    %v1474 = vrot.slane %v1473, 2
    %v1475 = vadd.f32 %v1473, %v1474
    %v1476 = vrot.slane %v1475, 1
    %v1477 = vadd.f32 %v1475, %v1476
    %v1478 = vsel %vm323, %v1414, 0.0
    %v1479 = vrot.slane %v1478, 4
    %v1480 = vadd.f32 %v1478, %v1479
    %v1481 = vrot.slane %v1480, 2
    %v1482 = vadd.f32 %v1480, %v1481
    %v1483 = vrot.slane %v1482, 1
    %v1484 = vadd.f32 %v1482, %v1483
    %v1485 = vsel %vm323, %v1415, 0.0
    %v1486 = vrot.slane %v1485, 4
    %v1487 = vadd.f32 %v1485, %v1486
    %v1488 = vrot.slane %v1487, 2
    %v1489 = vadd.f32 %v1487, %v1488
    %v1490 = vrot.slane %v1489, 1
    %v1491 = vadd.f32 %v1489, %v1490
    %v1492 = vsel %vm323, %v1416, 0.0
    %v1493 = vrot.slane %v1492, 4
    %v1494 = vadd.f32 %v1492, %v1493
    %v1495 = vrot.slane %v1494, 2
    %v1496 = vadd.f32 %v1494, %v1495
    %v1497 = vrot.slane %v1496, 1
    %v1498 = vadd.f32 %v1496, %v1497
    %v1499 = vsel %vm323, %v1417, 0.0
    %v1500 = vrot.slane %v1499, 4
    %v1501 = vadd.f32 %v1499, %v1500
    %v1502 = vrot.slane %v1501, 2
    %v1503 = vadd.f32 %v1501, %v1502
    %v1504 = vrot.slane %v1503, 1
    %v1505 = vadd.f32 %v1503, %v1504
    %v1506 = vsel %vm323, %v1418, 0.0
    %v1507 = vrot.slane %v1506, 4
    %v1508 = vadd.f32 %v1506, %v1507
    %v1509 = vrot.slane %v1508, 2
    %v1510 = vadd.f32 %v1508, %v1509
    %v1511 = vrot.slane %v1510, 1
    %v1512 = vadd.f32 %v1510, %v1511
    %v1513 = vsel %vm323, %v1419, 0.0
    %v1514 = vrot.slane %v1513, 4
    %v1515 = vadd.f32 %v1513, %v1514
    %v1516 = vrot.slane %v1515, 2
    %v1517 = vadd.f32 %v1515, %v1516
    %v1518 = vrot.slane %v1517, 1
    %v1519 = vadd.f32 %v1517, %v1518
    %v1520 = vsel %vm323, %v1420, 0.0
    %v1521 = vrot.slane %v1520, 4
    %v1522 = vadd.f32 %v1520, %v1521
    %v1523 = vrot.slane %v1522, 2
    %v1524 = vadd.f32 %v1522, %v1523
    %v1525 = vrot.slane %v1524, 1
    %v1526 = vadd.f32 %v1524, %v1525
    %v1527 = vsel %vm323, %v1421, 0.0
    %v1528 = vrot.slane %v1527, 4
    %v1529 = vadd.f32 %v1527, %v1528
    %v1530 = vrot.slane %v1529, 2
    %v1531 = vadd.f32 %v1529, %v1530
    %v1532 = vrot.slane %v1531, 1
    %v1533 = vadd.f32 %v1531, %v1532
    %v1534 = vmul.f32 %v1428, %v1031
    %v1535 = vmul.f32 %v1435, %v1031
    %v1536 = vmul.f32 %v1442, %v1031
    %v1537 = vmul.f32 %v1449, %v1031
    %v1538 = vmul.f32 %v1456, %v1031
    %v1539 = vmul.f32 %v1463, %v1031
    %v1540 = vmul.f32 %v1470, %v1031
    %v1541 = vmul.f32 %v1477, %v1031
    %v1542 = vmul.f32 %v1484, %v1031
    %v1543 = vmul.f32 %v1491, %v1031
    %v1544 = vmul.f32 %v1498, %v1031
    %v1545 = vmul.f32 %v1505, %v1031
    %v1546 = vmul.f32 %v1512, %v1031
    %v1547 = vmul.f32 %v1519, %v1031
    %v1548 = vmul.f32 %v1526, %v1031
    %v1549 = vmul.f32 %v1533, %v1031
    %v1550 = vadd.f32 %v1534, 1e-05
    %v1551 = vadd.f32 %v1535, 1e-05
    %v1552 = vadd.f32 %v1536, 1e-05
    %v1553 = vadd.f32 %v1537, 1e-05
    %v1554 = vadd.f32 %v1538, 1e-05
    %v1555 = vadd.f32 %v1539, 1e-05
    %v1556 = vadd.f32 %v1540, 1e-05
    %v1557 = vadd.f32 %v1541, 1e-05
    %v1558 = vadd.f32 %v1542, 1e-05
    %v1559 = vadd.f32 %v1543, 1e-05
    %v1560 = vadd.f32 %v1544, 1e-05
    %v1561 = vadd.f32 %v1545, 1e-05
    %v1562 = vadd.f32 %v1546, 1e-05
    %v1563 = vadd.f32 %v1547, 1e-05
    %v1564 = vadd.f32 %v1548, 1e-05
    %v1565 = vadd.f32 %v1549, 1e-05
    %v1566 = vrsqrt.pop %v1550
    %v1567 = vrsqrt.pop %v1551
    %v1568 = vrsqrt.pop %v1552
    %v1569 = vrsqrt.pop %v1553
    %v1570 = vrsqrt.pop %v1554
    %v1571 = vrsqrt.pop %v1555
    %v1572 = vrsqrt.pop %v1556
    %v1573 = vrsqrt.pop %v1557
    %v1574 = vrsqrt.pop %v1558
    %v1575 = vrsqrt.pop %v1559
    %v1576 = vrsqrt.pop %v1560
    %v1577 = vrsqrt.pop %v1561
    %v1578 = vrsqrt.pop %v1562
    %v1579 = vrsqrt.pop %v1563
    %v1580 = vrsqrt.pop %v1564
    %v1581 = vrsqrt.pop %v1565
    %v1582 = vmul.f32 %v1390, %v1566
    %v1583 = vmul.f32 %v1391, %v1567
    %v1584 = vmul.f32 %v1392, %v1568
    %v1585 = vmul.f32 %v1393, %v1569
    %v1586 = vmul.f32 %v1394, %v1570
    %v1587 = vmul.f32 %v1395, %v1571
    %v1588 = vmul.f32 %v1396, %v1572
    %v1589 = vmul.f32 %v1397, %v1573
    %v1590 = vmul.f32 %v1398, %v1574
    %v1591 = vmul.f32 %v1399, %v1575
    %v1592 = vmul.f32 %v1400, %v1576
    %v1593 = vmul.f32 %v1401, %v1577
    %v1594 = vmul.f32 %v1402, %v1578
    %v1595 = vmul.f32 %v1403, %v1579
    %v1596 = vmul.f32 %v1404, %v1580
    %v1597 = vmul.f32 %v1405, %v1581
    %v1598 = vld [vmem:[%s51] sm:$0x1]
    %v1600 = vlaneseq
    %v1601 = vshrl.u32 %v1600, 7
    %v1602 = vsub.s32 0, %v1601
    %v1603 = vrot.slane %v1598, %v1602
    %v1605 = vmul.f32 %v1582, %v1603
    %v1606 = vmul.f32 %v1583, %v1603
    %v1607 = vmul.f32 %v1584, %v1603
    %v1608 = vmul.f32 %v1585, %v1603
    %v1609 = vmul.f32 %v1586, %v1603
    %v1610 = vmul.f32 %v1587, %v1603
    %v1611 = vmul.f32 %v1588, %v1603
    %v1612 = vmul.f32 %v1589, %v1603
    %v1613 = vmul.f32 %v1590, %v1603
    %v1614 = vmul.f32 %v1591, %v1603
    %v1615 = vmul.f32 %v1592, %v1603
    %v1616 = vmul.f32 %v1593, %v1603
    %v1617 = vmul.f32 %v1594, %v1603
    %v1618 = vmul.f32 %v1595, %v1603
    %v1619 = vmul.f32 %v1596, %v1603
    %v1620 = vmul.f32 %v1597, %v1603
    %v1621 = vld [vmem:[%s53] sm:$0x1]
    %v1623 = vlaneseq
    %v1624 = vshrl.u32 %v1623, 7
    %v1625 = vsub.s32 0, %v1624
    %v1626 = vrot.slane %v1621, %v1625
    %v1628 = vadd.f32 %v1605, %v1626
    %v1629 = vadd.f32 %v1606, %v1626
    %v1630 = vadd.f32 %v1607, %v1626
    %v1631 = vadd.f32 %v1608, %v1626
    %v1632 = vadd.f32 %v1609, %v1626
    %v1633 = vadd.f32 %v1610, %v1626
    %v1634 = vadd.f32 %v1611, %v1626
    %v1635 = vadd.f32 %v1612, %v1626
    %v1636 = vadd.f32 %v1613, %v1626
    %v1637 = vadd.f32 %v1614, %v1626
    %v1638 = vadd.f32 %v1615, %v1626
    %v1639 = vadd.f32 %v1616, %v1626
    %v1640 = vadd.f32 %v1617, %v1626
    %v1641 = vadd.f32 %v1618, %v1626
    %v1642 = vadd.f32 %v1619, %v1626
    %v1643 = vadd.f32 %v1620, %v1626
    %v1644 = vmax.f32 %v1628, 0.0
    %v1645 = vmax.f32 %v1629, 0.0
    %v1646 = vmax.f32 %v1630, 0.0
    %v1647 = vmax.f32 %v1631, 0.0
    %v1648 = vmax.f32 %v1632, 0.0
    %v1649 = vmax.f32 %v1633, 0.0
    %v1650 = vmax.f32 %v1634, 0.0
    %v1651 = vmax.f32 %v1635, 0.0
    %v1652 = vmax.f32 %v1636, 0.0
    %v1653 = vmax.f32 %v1637, 0.0
    %v1654 = vmax.f32 %v1638, 0.0
    %v1655 = vmax.f32 %v1639, 0.0
    %v1656 = vmax.f32 %v1640, 0.0
    %v1657 = vmax.f32 %v1641, 0.0
    %v1658 = vmax.f32 %v1642, 0.0
    %v1659 = vmax.f32 %v1643, 0.0
    %v1660 = vld [vmem:[%s57] sm:$0xff]
    %v1661 = vld [vmem:[%s57 + $0x8] sm:$0xff]
    %v1662 = vld [vmem:[%s57 + $0x10] sm:$0xff]
    %v1663 = vld [vmem:[%s57 + $0x18] sm:$0xff]
    %v1664 = vld [vmem:[%s57 + $0x20] sm:$0xff]
    %v1665 = vld [vmem:[%s57 + $0x28] sm:$0xff]
    %v1666 = vld [vmem:[%s57 + $0x30] sm:$0xff]
    %v1667 = vld [vmem:[%s57 + $0x38] sm:$0xff]
    %v1668 = vld [vmem:[%s57 + $0x40] sm:$0xff]
    %v1669 = vld [vmem:[%s57 + $0x48] sm:$0xff]
    %v1670 = vld [vmem:[%s57 + $0x50] sm:$0xff]
    %v1671 = vld [vmem:[%s57 + $0x58] sm:$0xff]
    %v1672 = vld [vmem:[%s57 + $0x60] sm:$0xff]
    %v1673 = vld [vmem:[%s57 + $0x68] sm:$0xff]
    %v1674 = vld [vmem:[%s57 + $0x70] sm:$0xff]
    %v1675 = vld [vmem:[%s57 + $0x78] sm:$0xff]
    %v1676 = vmul.f32 %v1644, %v1660
    %v1677 = vmul.f32 %v1645, %v1661
    %v1678 = vmul.f32 %v1646, %v1662
    %v1679 = vmul.f32 %v1647, %v1663
    %v1680 = vmul.f32 %v1648, %v1664
    %v1681 = vmul.f32 %v1649, %v1665
    %v1682 = vmul.f32 %v1650, %v1666
    %v1683 = vmul.f32 %v1651, %v1667
    %v1684 = vmul.f32 %v1652, %v1668
    %v1685 = vmul.f32 %v1653, %v1669
    %v1686 = vmul.f32 %v1654, %v1670
    %v1687 = vmul.f32 %v1655, %v1671
    %v1688 = vmul.f32 %v1656, %v1672
    %v1689 = vmul.f32 %v1657, %v1673
    %v1690 = vmul.f32 %v1658, %v1674
    %v1691 = vmul.f32 %v1659, %v1675
    %v1693 = vsel %vm323, %v1676, 0
    %v1696 = vsel %vm323, %v1677, 0
    %v1699 = vsel %vm323, %v1678, 0
    %v1702 = vsel %vm323, %v1679, 0
    %v1705 = vsel %vm323, %v1680, 0
    %v1708 = vsel %vm323, %v1681, 0
    %v1711 = vsel %vm323, %v1682, 0
    %v1714 = vsel %vm323, %v1683, 0
    %v1717 = vsel %vm323, %v1684, 0
    %v1720 = vsel %vm323, %v1685, 0
    %v1723 = vsel %vm323, %v1686, 0
    %v1726 = vsel %vm323, %v1687, 0
    %v1729 = vsel %vm323, %v1688, 0
    %v1732 = vsel %vm323, %v1689, 0
    %v1735 = vsel %vm323, %v1690, 0
    %v1738 = vsel %vm323, %v1691, 0
    %1740 = vmatprep.subr.mxu0 0.0
    %1741 = vmatpush1.msra.mxu0 %v308
    %1742 = vmatprep.subr.mxu0 0.0
    %1743 = vmatpush1.msra.mxu0 %v309
    %1744 = vmatprep.subr.mxu0 0.0
    %1745 = vmatpush1.msra.mxu0 %v310
    %1746 = vmatprep.subr.mxu0 0.0
    %1747 = vmatpush1.msra.mxu0 %v311
    %1748 = vmatprep.subr.mxu0 0.0
    %1749 = vmatpush1.msra.mxu0 %v312
    %1750 = vmatprep.subr.mxu0 0.0
    %1751 = vmatpush1.msra.mxu0 %v313
    %1752 = vmatprep.subr.mxu0 0.0
    %1753 = vmatpush1.msra.mxu0 %v314
    %1754 = vmatprep.subr.mxu0 0.0
    %1755 = vmatpush1.msra.mxu0 %v315
    %1756 = vmatprep.subr.mxu0 0.0
    %1757 = vmatpush1.msra.mxu0 0.0
    %1758 = vmatprep.subr.mxu0 0.0
    %1759 = vmatpush1.msra.mxu0 0.0
    %1760 = vmatprep.subr.mxu0 0.0
    %1761 = vmatpush1.msra.mxu0 0.0
    %1762 = vmatprep.subr.mxu0 0.0
    %1763 = vmatpush1.msra.mxu0 0.0
    %1764 = vmatprep.subr.mxu0 0.0
    %1765 = vmatpush1.msra.mxu0 0.0
    %1766 = vmatprep.subr.mxu0 0.0
    %1767 = vmatpush1.msra.mxu0 0.0
    %1768 = vmatprep.subr.mxu0 0.0
    %1769 = vmatpush1.msra.mxu0 0.0
    %1770 = vmatprep.subr.mxu0 0.0
    %1771 = vmatpush1.msra.mxu0 0.0
    %1772 = vmatprep.subr.mxu0 0.0
    %1773 = vmatpush1.msra.mxu0 0.0
    %1774 = vmatprep.subr.mxu0 0.0
    %1775 = vmatpush1.msra.mxu0 0.0
    %1776 = vmatprep.subr.mxu0 0.0
    %1777 = vmatpush1.msra.mxu0 0.0
    %1778 = vmatprep.subr.mxu0 0.0
    %1779 = vmatpush1.msra.mxu0 0.0
    %1780 = vmatprep.subr.mxu0 0.0
    %1781 = vmatpush1.msra.mxu0 0.0
    %1782 = vmatprep.subr.mxu0 0.0
    %1783 = vmatpush1.msra.mxu0 0.0
    %1784 = vmatprep.subr.mxu0 0.0
    %1785 = vmatpush1.msra.mxu0 0.0
    %1786 = vmatprep.subr.mxu0 0.0
    %1787 = vmatpush1.msra.mxu0 0.0
    %1788 = vmatprep.subr.mxu0 0.0
    %1789 = vmatpush1.msra.mxu0 0.0
    %1790 = vmatprep.subr.mxu0 0.0
    %1791 = vmatpush1.msra.mxu0 0.0
    %1792 = vmatprep.subr.mxu0 0.0
    %1793 = vmatpush1.msra.mxu0 0.0
    %1794 = vmatprep.subr.mxu0 0.0
    %1795 = vmatpush1.msra.mxu0 0.0
    %1796 = vmatprep.subr.mxu0 0.0
    %1797 = vmatpush1.msra.mxu0 0.0
    %1798 = vmatprep.subr.mxu0 0.0
    %1799 = vmatpush1.msra.mxu0 0.0
    %1800 = vmatprep.subr.mxu0 0.0
    %1801 = vmatpush1.msra.mxu0 0.0
    %1802 = vmatprep.subr.mxu0 0.0
    %1803 = vmatpush1.msra.mxu0 0.0
    %1804 = vmatprep.mubr.f32.mxu0 0.0
    %1805 = vmatmul.mubr.f32.gmra.mrb[0].mxu0 %v1693
    %v1806 = vpop.f32.mrb[0].mxu0
    %v1807 = vadd.f32 %v321, %v1806
    %v1808 = vpop.f32.mrb[0].mxu0
    %1809 = vmatprep.mubr.f32.mxu0 0.0
    %1810 = vmatmul.mubr.f32.gmra.mrb[0].mxu0 %v1696
    %v1811 = vpop.f32.mrb[0].mxu0
    %v1812 = vadd.f32 %v321, %v1811
    %v1813 = vpop.f32.mrb[0].mxu0
    %1814 = vmatprep.mubr.f32.mxu0 0.0
    %1815 = vmatmul.mubr.f32.gmra.mrb[0].mxu0 %v1699
    %v1816 = vpop.f32.mrb[0].mxu0
    %v1817 = vadd.f32 %v321, %v1816
    %v1818 = vpop.f32.mrb[0].mxu0
    %1819 = vmatprep.mubr.f32.mxu0 0.0
    %1820 = vmatmul.mubr.f32.gmra.mrb[0].mxu0 %v1702
    %v1821 = vpop.f32.mrb[0].mxu0
    %v1822 = vadd.f32 %v321, %v1821
    %v1823 = vpop.f32.mrb[0].mxu0
    %1824 = vmatprep.mubr.f32.mxu0 0.0
    %1825 = vmatmul.mubr.f32.gmra.mrb[0].mxu0 %v1705
    %v1826 = vpop.f32.mrb[0].mxu0
    %v1827 = vadd.f32 %v321, %v1826
    %v1828 = vpop.f32.mrb[0].mxu0
    %1829 = vmatprep.mubr.f32.mxu0 0.0
    %1830 = vmatmul.mubr.f32.gmra.mrb[0].mxu0 %v1708
    %v1831 = vpop.f32.mrb[0].mxu0
    %v1832 = vadd.f32 %v321, %v1831
    %v1833 = vpop.f32.mrb[0].mxu0
    %1834 = vmatprep.mubr.f32.mxu0 0.0
    %1835 = vmatmul.mubr.f32.gmra.mrb[0].mxu0 %v1711
    %v1836 = vpop.f32.mrb[0].mxu0
    %v1837 = vadd.f32 %v321, %v1836
    %v1838 = vpop.f32.mrb[0].mxu0
    %1839 = vmatprep.mubr.f32.mxu0 0.0
    %1840 = vmatmul.mubr.f32.gmra.mrb[0].mxu0 %v1714
    %v1841 = vpop.f32.mrb[0].mxu0
    %v1842 = vadd.f32 %v321, %v1841
    %v1843 = vpop.f32.mrb[0].mxu0
    %1844 = vmatprep.mubr.f32.mxu0 0.0
    %1845 = vmatmul.mubr.f32.gmra.mrb[0].mxu0 %v1717
    %v1846 = vpop.f32.mrb[0].mxu0
    %v1847 = vadd.f32 %v321, %v1846
    %v1848 = vpop.f32.mrb[0].mxu0
    %1849 = vmatprep.mubr.f32.mxu0 0.0
    %1850 = vmatmul.mubr.f32.gmra.mrb[0].mxu0 %v1720
    %v1851 = vpop.f32.mrb[0].mxu0
    %v1852 = vadd.f32 %v321, %v1851
    %v1853 = vpop.f32.mrb[0].mxu0
    %1854 = vmatprep.mubr.f32.mxu0 0.0
    %1855 = vmatmul.mubr.f32.gmra.mrb[0].mxu0 %v1723
    %v1856 = vpop.f32.mrb[0].mxu0
    %v1857 = vadd.f32 %v321, %v1856
    %v1858 = vpop.f32.mrb[0].mxu0
    %1859 = vmatprep.mubr.f32.mxu0 0.0
    %1860 = vmatmul.mubr.f32.gmra.mrb[0].mxu0 %v1726
    %v1861 = vpop.f32.mrb[0].mxu0
    %v1862 = vadd.f32 %v321, %v1861
    %v1863 = vpop.f32.mrb[0].mxu0
    %1864 = vmatprep.mubr.f32.mxu0 0.0
    %1865 = vmatmul.mubr.f32.gmra.mrb[0].mxu0 %v1729
    %v1866 = vpop.f32.mrb[0].mxu0
    %v1867 = vadd.f32 %v321, %v1866
    %v1868 = vpop.f32.mrb[0].mxu0
    %1869 = vmatprep.mubr.f32.mxu0 0.0
    %1870 = vmatmul.mubr.f32.gmra.mrb[0].mxu0 %v1732
    %v1871 = vpop.f32.mrb[0].mxu0
    %v1872 = vadd.f32 %v321, %v1871
    %v1873 = vpop.f32.mrb[0].mxu0
    %1874 = vmatprep.mubr.f32.mxu0 0.0
    %1875 = vmatmul.mubr.f32.gmra.mrb[0].mxu0 %v1735
    %v1876 = vpop.f32.mrb[0].mxu0
    %v1877 = vadd.f32 %v321, %v1876
    %v1878 = vpop.f32.mrb[0].mxu0
    %1879 = vmatprep.mubr.f32.mxu0 0.0
    %1880 = vmatmul.mubr.f32.gmra.mrb[0].mxu0 %v1738
    %v1881 = vpop.f32.mrb[0].mxu0
    %v1882 = vadd.f32 %v321, %v1881
    %v1883 = vpop.f32.mrb[0].mxu0
    %1884 = vdwg.mxu0
    %vm1885 = vcmask 130048
    %1886 = vst.msk [vmem:[#allocation4] sm:$0xff] %vm1885, %v1807
    %1887 = vst.msk [vmem:[#allocation4 + $0x8] sm:$0xff] %vm1885, %v1812
    %1888 = vst.msk [vmem:[#allocation4 + $0x10] sm:$0xff] %vm1885, %v1817
    %1889 = vst.msk [vmem:[#allocation4 + $0x18] sm:$0xff] %vm1885, %v1822
    %1890 = vst.msk [vmem:[#allocation4 + $0x20] sm:$0xff] %vm1885, %v1827
    %1891 = vst.msk [vmem:[#allocation4 + $0x28] sm:$0xff] %vm1885, %v1832
    %1892 = vst.msk [vmem:[#allocation4 + $0x30] sm:$0xff] %vm1885, %v1837
    %1893 = vst.msk [vmem:[#allocation4 + $0x38] sm:$0xff] %vm1885, %v1842
    %1894 = vst.msk [vmem:[#allocation4 + $0x40] sm:$0xff] %vm1885, %v1847
    %1895 = vst.msk [vmem:[#allocation4 + $0x48] sm:$0xff] %vm1885, %v1852
    %1896 = vst.msk [vmem:[#allocation4 + $0x50] sm:$0xff] %vm1885, %v1857
    %1897 = vst.msk [vmem:[#allocation4 + $0x58] sm:$0xff] %vm1885, %v1862
    %1898 = vst.msk [vmem:[#allocation4 + $0x60] sm:$0xff] %vm1885, %v1867
    %1899 = vst.msk [vmem:[#allocation4 + $0x68] sm:$0xff] %vm1885, %v1872
    %1900 = vst.msk [vmem:[#allocation4 + $0x70] sm:$0xff] %vm1885, %v1877
    %1901 = vst.msk [vmem:[#allocation4 + $0x78] sm:$0xff] %vm1885, %v1882
    %v1902 = vsel %vm1885, %v1807, 0.0
    %v1903 = vsel %vm1885, %v1812, 0.0
    %v1904 = vadd.f32 %v1902, %v1903
    %v1905 = vsel %vm1885, %v1817, 0.0
    %v1906 = vadd.f32 %v1904, %v1905
    %v1907 = vsel %vm1885, %v1822, 0.0
    %v1908 = vadd.f32 %v1906, %v1907
    %v1909 = vsel %vm1885, %v1827, 0.0
    %v1910 = vadd.f32 %v1908, %v1909
    %v1911 = vsel %vm1885, %v1832, 0.0
    %v1912 = vadd.f32 %v1910, %v1911
    %v1913 = vsel %vm1885, %v1837, 0.0
    %v1914 = vadd.f32 %v1912, %v1913
    %v1915 = vsel %vm1885, %v1842, 0.0
    %v1916 = vadd.f32 %v1914, %v1915
    %v1917 = vsel %vm1885, %v1847, 0.0
    %v1918 = vadd.f32 %v1916, %v1917
    %v1919 = vsel %vm1885, %v1852, 0.0
    %v1920 = vadd.f32 %v1918, %v1919
    %v1921 = vsel %vm1885, %v1857, 0.0
    %v1922 = vadd.f32 %v1920, %v1921
    %v1923 = vsel %vm1885, %v1862, 0.0
    %v1924 = vadd.f32 %v1922, %v1923
    %v1925 = vsel %vm1885, %v1867, 0.0
    %v1926 = vadd.f32 %v1924, %v1925
    %v1927 = vsel %vm1885, %v1872, 0.0
    %v1928 = vadd.f32 %v1926, %v1927
    %v1929 = vsel %vm1885, %v1877, 0.0
    %v1930 = vadd.f32 %v1928, %v1929
    %v1931 = vsel %vm1885, %v1882, 0.0
    %v1932 = vadd.f32 %v1930, %v1931
    %v1933 = vrcp.pop 16.0
    %v1934 = vmul.f32 %v1932, %v1933
    %v1935 = vsub.f32 %v1807, %v1934
    %v1936 = vsub.f32 %v1812, %v1934
    %v1937 = vsub.f32 %v1817, %v1934
    %v1938 = vsub.f32 %v1822, %v1934
    %v1939 = vsub.f32 %v1827, %v1934
    %v1940 = vsub.f32 %v1832, %v1934
    %v1941 = vsub.f32 %v1837, %v1934
    %v1942 = vsub.f32 %v1842, %v1934
    %v1943 = vsub.f32 %v1847, %v1934
    %v1944 = vsub.f32 %v1852, %v1934
    %v1945 = vsub.f32 %v1857, %v1934
    %v1946 = vsub.f32 %v1862, %v1934
    %v1947 = vsub.f32 %v1867, %v1934
    %v1948 = vsub.f32 %v1872, %v1934
    %v1949 = vsub.f32 %v1877, %v1934
    %v1950 = vsub.f32 %v1882, %v1934
    %v1951 = vmul.f32 %v1935, %v1935
    %v1952 = vmul.f32 %v1936, %v1936
    %v1953 = vmul.f32 %v1937, %v1937
    %v1954 = vmul.f32 %v1938, %v1938
    %v1955 = vmul.f32 %v1939, %v1939
    %v1956 = vmul.f32 %v1940, %v1940
    %v1957 = vmul.f32 %v1941, %v1941
    %v1958 = vmul.f32 %v1942, %v1942
    %v1959 = vmul.f32 %v1943, %v1943
    %v1960 = vmul.f32 %v1944, %v1944
    %v1961 = vmul.f32 %v1945, %v1945
    %v1962 = vmul.f32 %v1946, %v1946
    %v1963 = vmul.f32 %v1947, %v1947
    %v1964 = vmul.f32 %v1948, %v1948
    %v1965 = vmul.f32 %v1949, %v1949
    %v1966 = vmul.f32 %v1950, %v1950
    %v1967 = vsel %vm1885, %v1951, 0.0
    %v1968 = vsel %vm1885, %v1952, 0.0
    %v1969 = vadd.f32 %v1967, %v1968
    %v1970 = vsel %vm1885, %v1953, 0.0
    %v1971 = vadd.f32 %v1969, %v1970
    %v1972 = vsel %vm1885, %v1954, 0.0
    %v1973 = vadd.f32 %v1971, %v1972
    %v1974 = vsel %vm1885, %v1955, 0.0
    %v1975 = vadd.f32 %v1973, %v1974
    %v1976 = vsel %vm1885, %v1956, 0.0
    %v1977 = vadd.f32 %v1975, %v1976
    %v1978 = vsel %vm1885, %v1957, 0.0
    %v1979 = vadd.f32 %v1977, %v1978
    %v1980 = vsel %vm1885, %v1958, 0.0
    %v1981 = vadd.f32 %v1979, %v1980
    %v1982 = vsel %vm1885, %v1959, 0.0
    %v1983 = vadd.f32 %v1981, %v1982
    %v1984 = vsel %vm1885, %v1960, 0.0
    %v1985 = vadd.f32 %v1983, %v1984
    %v1986 = vsel %vm1885, %v1961, 0.0
    %v1987 = vadd.f32 %v1985, %v1986
    %v1988 = vsel %vm1885, %v1962, 0.0
    %v1989 = vadd.f32 %v1987, %v1988
    %v1990 = vsel %vm1885, %v1963, 0.0
    %v1991 = vadd.f32 %v1989, %v1990
    %v1992 = vsel %vm1885, %v1964, 0.0
    %v1993 = vadd.f32 %v1991, %v1992
    %v1994 = vsel %vm1885, %v1965, 0.0
    %v1995 = vadd.f32 %v1993, %v1994
    %v1996 = vsel %vm1885, %v1966, 0.0
    %v1997 = vadd.f32 %v1995, %v1996
    %v1998 = vmul.f32 %v1997, 0.06666667
    %v1999 = vmax.f32 %v1998, 0.0
    %v2000 = vadd.f32 %v943, %v1999
    %v2001 = vrsqrt.pop %v2000
    %v2002 = vmul.f32 %v2000, %v2001
    %vm2003 = vcmp.eq.f32.partialorder %v2000, inf
    %v2004 = vsel %vm2003, %v2000, %v2002
    %vm2005 = vcmp.eq.f32.partialorder %v2000, 0.0
    %v2006 = vand.u32 %v2000, 2147483648
    %v2007 = vsel %vm2005, %v2006, %v2004
    %v2008 = vmul.f32 %v2007, 1.96
    %v2009 = vsub.f32 %v394, %v2008
    %v2010 = vadd.f32 %v394, %v2008
    %2012 = vrot.lane.b32.xlu0 %v674, 16
    %v2013 = vpop.permute.xlu0 %2012
    %2016 = vrot.lane.b32.xlu0 %v943, 32
    %v2017 = vpop.permute.xlu0 %2016
    %2020 = vrot.lane.b32.xlu0 %v1934, 48
    %v2021 = vpop.permute.xlu0 %2020
    %2024 = vrot.lane.b32.xlu0 %v1999, 64
    %v2025 = vpop.permute.xlu0 %2024
    %2028 = vrot.lane.b32.xlu0 %v2000, 80
    %v2029 = vpop.permute.xlu0 %2028
    %2032 = vrot.lane.b32.xlu0 %v2009, 96
    %v2033 = vpop.permute.xlu0 %2032
    %2036 = vrot.lane.b32.xlu0 %v2010, 112
    %v2037 = vpop.permute.xlu0 %2036
    %v2039 = vsel %vm1885, %v394, %v2013
    %v2040 = vsel %vm139, %v2039, %v2017
    %vm2041 = vcmask 392192
    %v2042 = vsel %vm2041, %v2040, %v2021
    %v2043 = vsel %vm323, %v2042, %v2025
    %vm2044 = vcmask 654336
    %v2045 = vsel %vm2044, %v2043, %v2029
    %vm2046 = vcmask 785408
    %v2047 = vsel %vm2046, %v2045, %v2033
    %vm2048 = vcmask 916480
    %v2049 = vsel %vm2048, %v2047, %v2037
    %2050 = vst [vmem:[#allocation2] sm:$0xff] %v2049
    // Predicated region
    $region118: #{tpu_custom_call.1} parent=1 // pred_check
      _
    $region119: #{tpu_custom_call.1} parent=1 // pred_check_branch
      %2052 = sbr.rel (0) target = $region121
    $region120: #{tpu_custom_call.1} parent=1 // pred_region
      %s2054 = ssub.s32 128, 128
      %2055 = vsyncadd [#allocation3], %s2054
      %s2057 = sshll.u32 [#allocation2], 4
      %s2058 = int_to_ptr.vmem [resolvable:$true] %s2057
      %2060 = dma.vmem_to_hbm [thread:$0]  %s2058, 128, %s59, [#allocation3]
    $region121: #{tpu_custom_call.1} parent=1 // pred_fallthru
      _
    // Predicated region
    $region122: #{tpu_custom_call.1} parent=1 // pred_check
      _
    $region123: #{tpu_custom_call.1} parent=1 // pred_check_branch
      %2062 = sbr.rel (0) target = $region125
    $region124: #{tpu_custom_call.1} parent=1 // pred_region
      %s2064 = ssub.s32 2048, 2048
      %2065 = vsyncadd [#allocation5], %s2064
      %s2066 = sshll.u32 [#allocation4], 4
      %s2067 = int_to_ptr.vmem [resolvable:$true] %s2066
      %2072 = dma.vmem_to_hbm [thread:$0]  %s2067, 2048, %s61, [#allocation5], 128, 128, 8
    $region125: #{tpu_custom_call.1} parent=1 // pred_fallthru
      _
    // Predicated region
    $region126: #{tpu_custom_call.1} parent=1 // pred_check
      _
    $region127: #{tpu_custom_call.1} parent=1 // pred_check_branch
      %2074 = sbr.rel (0) target = $region129
    $region128: #{tpu_custom_call.1} parent=1 // pred_region
      %2075 = dma.done [#allocation3], 128
    $region129: #{tpu_custom_call.1} parent=1 // pred_fallthru
      _
    // Predicated region
    $region130: #{tpu_custom_call.1} parent=1 // pred_check
      _
    $region131: #{tpu_custom_call.1} parent=1 // pred_check_branch
      %2077 = sbr.rel (0) target = $region133
    $region132: #{tpu_custom_call.1} parent=1 // pred_region
      %2078 = dma.done [#allocation5], 2048
    $region133: #{tpu_custom_call.1} parent=1 // pred_fallthru
      _
    %2079 = vsyncpa [#allocation3], 1
    %2080 = vsyncpa [#allocation5], 1

</llo_original>
